<compile_context>
chip_gen: v7x
topology: tpu7x:2x2x1
jax: 0.10.0
libtpu: 0.0.40
codegen_flags: <defaults>
</compile_context>

<pallas_src>
import functools
import math

import jax
import jax.numpy as jnp
from jax import lax
from jax.experimental import pallas as pl
from jax.experimental.pallas import tpu as pltpu


def _corrector_kernel(x_ref, w_ref, b_ref, out_ref, slab_ref, stack_ref, *,
                      B, Cin, H, W, Wqp):
    """B images per grid step.

    x_ref     : (B, Cin, H*W)      raw images, rows flattened
    w_ref     : (Cout, 9*Cin)      folded weights (identity + sign included),
                                   column index = (dy*3+dx)*Cin + ci
    b_ref     : (Cout, 1)          folded bias (= -b)
    out_ref   : (B, Cout, H*W)     dense output block
    slab_ref  : (Cin, (H+3)*Wqp)   zero-padded image scratch (shared per step)
    stack_ref : (9*Cin, H*Wqp)     stacked shifted taps (fused-matmul RHS)
    """
    Mw = H * Wqp

    # Zero once per step: the image rows are fully re-written for every image,
    # only the halo (top/bottom/left/right padding) must stay zero.
    slab_ref[...] = jnp.zeros_like(slab_ref)

    for b in range(B):                                   # B is small (<= 8)
        ximg = x_ref[b]                                  # (Cin, H*W), one VMEM load

        # Scatter the image rows into the padded slab (1 top/left halo,
        # >=1 right / 2 bottom halo so every shifted window stays in bounds).
        for h in range(H):
            slab_ref[:, (h + 1) * Wqp + 1:(h + 1) * Wqp + 1 + W] = \
                ximg[:, h * W:(h + 1) * W]

        # Stack the 9 statically shifted tap windows -> (9*Cin, Mw) operand.
        for dy in range(3):
            for dx in range(3):
                t = dy * 3 + dx
                s = dy * Wqp + dx
                stack_ref[t * Cin:(t + 1) * Cin, :] = slab_ref[:, s:s + Mw]

        # One fused K = 9*Cin matmul does conv + identity + sign; HIGHEST is
        # essentially free here (kernel is HBM-bound) and keeps f32 numerics.
        res = jnp.dot(w_ref[...], stack_ref[...],
                      preferred_element_type=jnp.float32,
                      precision=lax.Precision.HIGHEST) + b_ref[...]

        # Narrow the Wqp-wide rows back to W: dense (Cout, H*W) output block,
        # no extra narrowing pass over HBM on the host side.
        for h in range(H):
            out_ref[b, :, h * W:(h + 1) * W] = \
                res[:, h * Wqp:h * Wqp + W].astype(out_ref.dtype)


def _pick_image_batch(N, cap):
    """Largest divisor of N that is <= cap and keeps >= 2 grid steps (if N >= 2)."""
    best = 1
    for cand in range(1, min(N, max(cap, 1)) + 1):
        if N % cand == 0 and (N == 1 or N // cand >= 2):
            best = cand
    return best


def corrector_forward(x_nchw, w_oihw, b, channels_input_in_output,
                      downscale_factor=1):
    """Pallas implementation of Corrector.forward (model = Conv2d 3x3, pad=1)."""
    if downscale_factor > 1:
        # TODO(synk): antialiased bilinear down/up-sampling (F.interpolate) has
        # no clean Pallas equivalent here; only downscale_factor == 1 is done.
        raise NotImplementedError("downscale_factor > 1 not supported")

    N, Cin, H, W = x_nchw.shape
    Cout, Cin_w, KH, KW = w_oihw.shape
    assert Cin_w == Cin and (KH, KW) == (3, 3)
    channels = tuple(int(c) for c in channels_input_in_output)
    assert len(channels) == Cout

    # Internal padded row width: >= W+2 (1 left + >=1 right halo); prefer
    # H*Wqp % 128 == 0 so the in-kernel slab/stack/matmul layout is lane-dense.
    base = W + 2
    k = 128 // math.gcd(H, 128)
    Wqp = -(-base // k) * k
    if Wqp > 2 * base:                       # alignment too costly; keep it modest
        Wqp = -(-base // 8) * 8
    L = (H + 3) * Wqp                        # slab length (1 top + 2 bottom halo rows)
    Mw = H * Wqp
    HW = H * W

    # Fold the identity channels and the sign into the conv:
    #   out = x[:, channels] - (conv_w(x) + b) = conv_{w_eff}(x) + (-b)
    # with w_eff = -w and +1 on the centre tap of the selected input channel.
    w_eff = -w_oihw.astype(jnp.float32)
    w_eff = w_eff.at[jnp.arange(Cout), jnp.asarray(channels, dtype=jnp.int32),
                     1, 1].add(1.0)
    # (Cout, 9*Cin) with column index = (dy*3+dx)*Cin + ci
    wmat = jnp.transpose(w_eff, (0, 2, 3, 1)).reshape(Cout, 9 * Cin)
    b2d = (-b).astype(jnp.float32).reshape(Cout, 1)

    # Metadata-only: no pad / copy pass over x in HBM.
    xflat = x_nchw.astype(jnp.float32).reshape(N, Cin, HW)

    # Per-chip VMEM budget (v7x has 64 MiB per TC, v5e/v6e 128 MiB).
    try:
        vmem_cap = int(pltpu.get_tpu_info().vmem_capacity_bytes)
    except Exception:  # conservative fallback (v7x per-core size)
        vmem_cap = 64 * 1024 * 1024
    vmem_budget = min(int(vmem_cap * 0.7), 96 * 1024 * 1024)

    # Images per grid step: fill the budget (double-buffered in/out blocks),
    # keep the in-kernel unrolled loop short, keep >= 2 parallel steps.
    per_img = 4 * (Cin + Cout) * HW
    scratch = 4 * (Cin * L + 9 * Cin * Mw)
    avail = max(vmem_budget - scratch - (4 << 20), 2 * per_img)
    b_cap = min(max(avail // (2 * per_img), 1), 8)
    B = _pick_image_batch(N, b_cap)

    kernel = functools.partial(_corrector_kernel, B=B, Cin=Cin, H=H, W=W, Wqp=Wqp)

    out_flat = pl.pallas_call(
        kernel,
        out_shape=jax.ShapeDtypeStruct((N, Cout, HW), jnp.float32),
        grid_spec=pltpu.PrefetchScalarGridSpec(
            num_scalar_prefetch=0,
            grid=(N // B,),                                      # B images per step
            in_specs=[
                pl.BlockSpec((B, Cin, HW), lambda n: (n, 0, 0)),     # raw images
                pl.BlockSpec((Cout, 9 * Cin), lambda n: (0, 0)),     # folded weights
                pl.BlockSpec((Cout, 1), lambda n: (0, 0)),           # folded bias
            ],
            out_specs=pl.BlockSpec((B, Cout, HW), lambda n: (n, 0, 0)),
            scratch_shapes=[
                pltpu.VMEM((Cin, L), jnp.float32),                   # padded slab
                pltpu.VMEM((9 * Cin, Mw), jnp.float32),              # stacked taps
            ],
        ),
        compiler_params=pltpu.CompilerParams(
            dimension_semantics=("parallel",),
            vmem_limit_bytes=vmem_budget,
        ),
    )(xflat, wmat, b2d)

    # Contiguous reshape only; the padded width never reaches HBM.
    return out_flat.reshape(N, Cout, H, W)


def corrector_reference(x_nchw, w_oihw, b, channels):
    """Pure-JAX reference of the same forward (for correctness check)."""
    corr = lax.conv_general_dilated(
        x_nchw, w_oihw, window_strides=(1, 1), padding="SAME",
        dimension_numbers=("NCHW", "OIHW", "NCHW"),
        precision=lax.Precision.HIGHEST,
    ) + b.reshape(1, -1, 1, 1)
    return x_nchw[:, jnp.asarray(channels)] - corr


if __name__ == "__main__":
    key = jax.random.PRNGKey(0)
    kx, kw, kb = jax.random.split(key, 3)

    N, Cin, H, W = 2, 4, 16, 16
    Cout = 3
    channels_input_in_output = [0, 2, 3]   # len == Cout (channels of x kept in output)

    x = jax.random.normal(kx, (N, Cin, H, W), dtype=jnp.float32)
    w = jax.random.normal(kw, (Cout, Cin, 3, 3), dtype=jnp.float32) * 0.1
    b = jax.random.normal(kb, (Cout,), dtype=jnp.float32) * 0.1

    out = corrector_forward(x, w, b, channels_input_in_output, downscale_factor=1)
    out = jax.block_until_ready(out)

    ref = corrector_reference(x, w, b, channels_input_in_output)
    assert out.shape == (N, Cout, H, W), out.shape
    max_err = float(jnp.max(jnp.abs(out - ref)))
    # Both kernel (precision=HIGHEST, identity folded into the centre tap) and
    # the reference are f32-accurate, so the error should be tiny.
    assert max_err < 1e-3, f"max abs err too large: {max_err}"

    print("KERNEL_OK")
</pallas_src>

<mosaic_0001>
module attributes {stable_mosaic.version = 11 : i64} {
  func.func @_corrector_kernel(%arg0: i32, %arg1: memref<1x4x256xf32, #tpu.memory_space<vmem>>, %arg2: memref<3x36xf32, #tpu.memory_space<vmem>>, %arg3: memref<3x1xf32, #tpu.memory_space<vmem>>, %arg4: memref<1x3x256xf32, #tpu.memory_space<vmem>>, %arg5: memref<4x456xf32, #tpu.memory_space<vmem>>, %arg6: memref<36x384xf32, #tpu.memory_space<vmem>>) attributes {dimension_semantics = [#tpu.dimension_semantics<parallel>], iteration_bounds = array<i64: 2>, scalar_prefetch = 0 : i64, scratch_operands = 2 : i64, tpu.core_type = #tpu.core_type<tc>, window_params = [{transform_indices = @transform_0, window_bounds = array<i64: 1, 4, 256>}, {pipeline_mode = #tpu.pipeline_mode<synchronous>, transform_indices = @transform_1, window_bounds = array<i64: 3, 36>}, {pipeline_mode = #tpu.pipeline_mode<synchronous>, transform_indices = @transform_2, window_bounds = array<i64: 3, 1>}, {transform_indices = @transform_3, window_bounds = array<i64: 1, 3, 256>}]} {
    %cst = arith.constant 0.000000e+00 : f32
    %0 = vector.broadcast %cst : f32 to vector<4x456xf32>
    %c0 = arith.constant 0 : index
    %c0_0 = arith.constant 0 : index
    %1 = vector.load %arg5[%c0, %c0_0] : memref<4x456xf32, #tpu.memory_space<vmem>>, vector<4x456xf32>
    tpu.vector_store %arg5[%c0, %c0_0], %0 {strides = array<i32>} : memref<4x456xf32, #tpu.memory_space<vmem>>, vector<4x456xf32>,
    %c0_1 = arith.constant 0 : index
    %c0_2 = arith.constant 0 : index
    %c0_3 = arith.constant 0 : index
    %2 = vector.load %arg1[%c0_1, %c0_2, %c0_3] : memref<1x4x256xf32, #tpu.memory_space<vmem>>, vector<1x4x256xf32>
    %3 = vector.shape_cast %2 : vector<1x4x256xf32> to vector<4x256xf32>
    %4 = vector.extract_strided_slice %3 {offsets = [0, 0], sizes = [4, 16], strides = [1, 1]} : vector<4x256xf32> to vector<4x16xf32>
    %c0_4 = arith.constant 0 : index
    %c25 = arith.constant 25 : index
    %5 = vector.load %arg5[%c0_4, %c25] : memref<4x456xf32, #tpu.memory_space<vmem>>, vector<4x16xf32>
    tpu.vector_store %arg5[%c0_4, %c25], %4 {strides = array<i32>} : memref<4x456xf32, #tpu.memory_space<vmem>>, vector<4x16xf32>,
    %6 = vector.extract_strided_slice %3 {offsets = [0, 16], sizes = [4, 16], strides = [1, 1]} : vector<4x256xf32> to vector<4x16xf32>
    %c0_5 = arith.constant 0 : index
    %c49 = arith.constant 49 : index
    %7 = vector.load %arg5[%c0_5, %c49] : memref<4x456xf32, #tpu.memory_space<vmem>>, vector<4x16xf32>
    tpu.vector_store %arg5[%c0_5, %c49], %6 {strides = array<i32>} : memref<4x456xf32, #tpu.memory_space<vmem>>, vector<4x16xf32>,
    %8 = vector.extract_strided_slice %3 {offsets = [0, 32], sizes = [4, 16], strides = [1, 1]} : vector<4x256xf32> to vector<4x16xf32>
    %c0_6 = arith.constant 0 : index
    %c73 = arith.constant 73 : index
    %9 = vector.load %arg5[%c0_6, %c73] : memref<4x456xf32, #tpu.memory_space<vmem>>, vector<4x16xf32>
    tpu.vector_store %arg5[%c0_6, %c73], %8 {strides = array<i32>} : memref<4x456xf32, #tpu.memory_space<vmem>>, vector<4x16xf32>,
    %10 = vector.extract_strided_slice %3 {offsets = [0, 48], sizes = [4, 16], strides = [1, 1]} : vector<4x256xf32> to vector<4x16xf32>
    %c0_7 = arith.constant 0 : index
    %c97 = arith.constant 97 : index
    %11 = vector.load %arg5[%c0_7, %c97] : memref<4x456xf32, #tpu.memory_space<vmem>>, vector<4x16xf32>
    tpu.vector_store %arg5[%c0_7, %c97], %10 {strides = array<i32>} : memref<4x456xf32, #tpu.memory_space<vmem>>, vector<4x16xf32>,
    %12 = vector.extract_strided_slice %3 {offsets = [0, 64], sizes = [4, 16], strides = [1, 1]} : vector<4x256xf32> to vector<4x16xf32>
    %c0_8 = arith.constant 0 : index
    %c121 = arith.constant 121 : index
    %13 = vector.load %arg5[%c0_8, %c121] : memref<4x456xf32, #tpu.memory_space<vmem>>, vector<4x16xf32>
    tpu.vector_store %arg5[%c0_8, %c121], %12 {strides = array<i32>} : memref<4x456xf32, #tpu.memory_space<vmem>>, vector<4x16xf32>,
    %14 = vector.extract_strided_slice %3 {offsets = [0, 80], sizes = [4, 16], strides = [1, 1]} : vector<4x256xf32> to vector<4x16xf32>
    %c0_9 = arith.constant 0 : index
    %c145 = arith.constant 145 : index
    %15 = vector.load %arg5[%c0_9, %c145] : memref<4x456xf32, #tpu.memory_space<vmem>>, vector<4x16xf32>
    tpu.vector_store %arg5[%c0_9, %c145], %14 {strides = array<i32>} : memref<4x456xf32, #tpu.memory_space<vmem>>, vector<4x16xf32>,
    %16 = vector.extract_strided_slice %3 {offsets = [0, 96], sizes = [4, 16], strides = [1, 1]} : vector<4x256xf32> to vector<4x16xf32>
    %c0_10 = arith.constant 0 : index
    %c169 = arith.constant 169 : index
    %17 = vector.load %arg5[%c0_10, %c169] : memref<4x456xf32, #tpu.memory_space<vmem>>, vector<4x16xf32>
    tpu.vector_store %arg5[%c0_10, %c169], %16 {strides = array<i32>} : memref<4x456xf32, #tpu.memory_space<vmem>>, vector<4x16xf32>,
    %18 = vector.extract_strided_slice %3 {offsets = [0, 112], sizes = [4, 16], strides = [1, 1]} : vector<4x256xf32> to vector<4x16xf32>
    %c0_11 = arith.constant 0 : index
    %c193 = arith.constant 193 : index
    %19 = vector.load %arg5[%c0_11, %c193] : memref<4x456xf32, #tpu.memory_space<vmem>>, vector<4x16xf32>
    tpu.vector_store %arg5[%c0_11, %c193], %18 {strides = array<i32>} : memref<4x456xf32, #tpu.memory_space<vmem>>, vector<4x16xf32>,
    %20 = vector.extract_strided_slice %3 {offsets = [0, 128], sizes = [4, 16], strides = [1, 1]} : vector<4x256xf32> to vector<4x16xf32>
    %c0_12 = arith.constant 0 : index
    %c217 = arith.constant 217 : index
    %21 = vector.load %arg5[%c0_12, %c217] : memref<4x456xf32, #tpu.memory_space<vmem>>, vector<4x16xf32>
    tpu.vector_store %arg5[%c0_12, %c217], %20 {strides = array<i32>} : memref<4x456xf32, #tpu.memory_space<vmem>>, vector<4x16xf32>,
    %22 = vector.extract_strided_slice %3 {offsets = [0, 144], sizes = [4, 16], strides = [1, 1]} : vector<4x256xf32> to vector<4x16xf32>
    %c0_13 = arith.constant 0 : index
    %c241 = arith.constant 241 : index
    %23 = vector.load %arg5[%c0_13, %c241] : memref<4x456xf32, #tpu.memory_space<vmem>>, vector<4x16xf32>
    tpu.vector_store %arg5[%c0_13, %c241], %22 {strides = array<i32>} : memref<4x456xf32, #tpu.memory_space<vmem>>, vector<4x16xf32>,
    %24 = vector.extract_strided_slice %3 {offsets = [0, 160], sizes = [4, 16], strides = [1, 1]} : vector<4x256xf32> to vector<4x16xf32>
    %c0_14 = arith.constant 0 : index
    %c265 = arith.constant 265 : index
    %25 = vector.load %arg5[%c0_14, %c265] : memref<4x456xf32, #tpu.memory_space<vmem>>, vector<4x16xf32>
    tpu.vector_store %arg5[%c0_14, %c265], %24 {strides = array<i32>} : memref<4x456xf32, #tpu.memory_space<vmem>>, vector<4x16xf32>,
    %26 = vector.extract_strided_slice %3 {offsets = [0, 176], sizes = [4, 16], strides = [1, 1]} : vector<4x256xf32> to vector<4x16xf32>
    %c0_15 = arith.constant 0 : index
    %c289 = arith.constant 289 : index
    %27 = vector.load %arg5[%c0_15, %c289] : memref<4x456xf32, #tpu.memory_space<vmem>>, vector<4x16xf32>
    tpu.vector_store %arg5[%c0_15, %c289], %26 {strides = array<i32>} : memref<4x456xf32, #tpu.memory_space<vmem>>, vector<4x16xf32>,
    %28 = vector.extract_strided_slice %3 {offsets = [0, 192], sizes = [4, 16], strides = [1, 1]} : vector<4x256xf32> to vector<4x16xf32>
    %c0_16 = arith.constant 0 : index
    %c313 = arith.constant 313 : index
    %29 = vector.load %arg5[%c0_16, %c313] : memref<4x456xf32, #tpu.memory_space<vmem>>, vector<4x16xf32>
    tpu.vector_store %arg5[%c0_16, %c313], %28 {strides = array<i32>} : memref<4x456xf32, #tpu.memory_space<vmem>>, vector<4x16xf32>,
    %30 = vector.extract_strided_slice %3 {offsets = [0, 208], sizes = [4, 16], strides = [1, 1]} : vector<4x256xf32> to vector<4x16xf32>
    %c0_17 = arith.constant 0 : index
    %c337 = arith.constant 337 : index
    %31 = vector.load %arg5[%c0_17, %c337] : memref<4x456xf32, #tpu.memory_space<vmem>>, vector<4x16xf32>
    tpu.vector_store %arg5[%c0_17, %c337], %30 {strides = array<i32>} : memref<4x456xf32, #tpu.memory_space<vmem>>, vector<4x16xf32>,
    %32 = vector.extract_strided_slice %3 {offsets = [0, 224], sizes = [4, 16], strides = [1, 1]} : vector<4x256xf32> to vector<4x16xf32>
    %c0_18 = arith.constant 0 : index
    %c361 = arith.constant 361 : index
    %33 = vector.load %arg5[%c0_18, %c361] : memref<4x456xf32, #tpu.memory_space<vmem>>, vector<4x16xf32>
    tpu.vector_store %arg5[%c0_18, %c361], %32 {strides = array<i32>} : memref<4x456xf32, #tpu.memory_space<vmem>>, vector<4x16xf32>,
    %34 = vector.extract_strided_slice %3 {offsets = [0, 240], sizes = [4, 16], strides = [1, 1]} : vector<4x256xf32> to vector<4x16xf32>
    %c0_19 = arith.constant 0 : index
    %c385 = arith.constant 385 : index
    %35 = vector.load %arg5[%c0_19, %c385] : memref<4x456xf32, #tpu.memory_space<vmem>>, vector<4x16xf32>
    tpu.vector_store %arg5[%c0_19, %c385], %34 {strides = array<i32>} : memref<4x456xf32, #tpu.memory_space<vmem>>, vector<4x16xf32>,
    %c0_20 = arith.constant 0 : index
    %c0_21 = arith.constant 0 : index
    %36 = vector.load %arg5[%c0_20, %c0_21] : memref<4x456xf32, #tpu.memory_space<vmem>>, vector<4x384xf32>
    %c0_22 = arith.constant 0 : index
    %c0_23 = arith.constant 0 : index
    %37 = vector.load %arg6[%c0_22, %c0_23] : memref<36x384xf32, #tpu.memory_space<vmem>>, vector<4x384xf32>
    tpu.vector_store %arg6[%c0_22, %c0_23], %36 {strides = array<i32>} : memref<36x384xf32, #tpu.memory_space<vmem>>, vector<4x384xf32>,
    %c0_24 = arith.constant 0 : index
    %c1 = arith.constant 1 : index
    %38 = vector.load %arg5[%c0_24, %c1] : memref<4x456xf32, #tpu.memory_space<vmem>>, vector<4x384xf32>
    %c4 = arith.constant 4 : index
    %c0_25 = arith.constant 0 : index
    %39 = vector.load %arg6[%c4, %c0_25] : memref<36x384xf32, #tpu.memory_space<vmem>>, vector<4x384xf32>
    tpu.vector_store %arg6[%c4, %c0_25], %38 {strides = array<i32>} : memref<36x384xf32, #tpu.memory_space<vmem>>, vector<4x384xf32>,
    %c0_26 = arith.constant 0 : index
    %c2 = arith.constant 2 : index
    %40 = vector.load %arg5[%c0_26, %c2] : memref<4x456xf32, #tpu.memory_space<vmem>>, vector<4x384xf32>
    %c8 = arith.constant 8 : index
    %c0_27 = arith.constant 0 : index
    %41 = vector.load %arg6[%c8, %c0_27] : memref<36x384xf32, #tpu.memory_space<vmem>>, vector<4x384xf32>
    tpu.vector_store %arg6[%c8, %c0_27], %40 {strides = array<i32>} : memref<36x384xf32, #tpu.memory_space<vmem>>, vector<4x384xf32>,
    %c0_28 = arith.constant 0 : index
    %c24 = arith.constant 24 : index
    %42 = vector.load %arg5[%c0_28, %c24] : memref<4x456xf32, #tpu.memory_space<vmem>>, vector<4x384xf32>
    %c12 = arith.constant 12 : index
    %c0_29 = arith.constant 0 : index
    %43 = vector.load %arg6[%c12, %c0_29] : memref<36x384xf32, #tpu.memory_space<vmem>>, vector<4x384xf32>
    tpu.vector_store %arg6[%c12, %c0_29], %42 {strides = array<i32>} : memref<36x384xf32, #tpu.memory_space<vmem>>, vector<4x384xf32>,
    %c0_30 = arith.constant 0 : index
    %c25_31 = arith.constant 25 : index
    %44 = vector.load %arg5[%c0_30, %c25_31] : memref<4x456xf32, #tpu.memory_space<vmem>>, vector<4x384xf32>
    %c16 = arith.constant 16 : index
    %c0_32 = arith.constant 0 : index
    %45 = vector.load %arg6[%c16, %c0_32] : memref<36x384xf32, #tpu.memory_space<vmem>>, vector<4x384xf32>
    tpu.vector_store %arg6[%c16, %c0_32], %44 {strides = array<i32>} : memref<36x384xf32, #tpu.memory_space<vmem>>, vector<4x384xf32>,
    %c0_33 = arith.constant 0 : index
    %c26 = arith.constant 26 : index
    %46 = vector.load %arg5[%c0_33, %c26] : memref<4x456xf32, #tpu.memory_space<vmem>>, vector<4x384xf32>
    %c20 = arith.constant 20 : index
    %c0_34 = arith.constant 0 : index
    %47 = vector.load %arg6[%c20, %c0_34] : memref<36x384xf32, #tpu.memory_space<vmem>>, vector<4x384xf32>
    tpu.vector_store %arg6[%c20, %c0_34], %46 {strides = array<i32>} : memref<36x384xf32, #tpu.memory_space<vmem>>, vector<4x384xf32>,
    %c0_35 = arith.constant 0 : index
    %c48 = arith.constant 48 : index
    %48 = vector.load %arg5[%c0_35, %c48] : memref<4x456xf32, #tpu.memory_space<vmem>>, vector<4x384xf32>
    %c24_36 = arith.constant 24 : index
    %c0_37 = arith.constant 0 : index
    %49 = vector.load %arg6[%c24_36, %c0_37] : memref<36x384xf32, #tpu.memory_space<vmem>>, vector<4x384xf32>
    tpu.vector_store %arg6[%c24_36, %c0_37], %48 {strides = array<i32>} : memref<36x384xf32, #tpu.memory_space<vmem>>, vector<4x384xf32>,
    %c0_38 = arith.constant 0 : index
    %c49_39 = arith.constant 49 : index
    %50 = vector.load %arg5[%c0_38, %c49_39] : memref<4x456xf32, #tpu.memory_space<vmem>>, vector<4x384xf32>
    %c28 = arith.constant 28 : index
    %c0_40 = arith.constant 0 : index
    %51 = vector.load %arg6[%c28, %c0_40] : memref<36x384xf32, #tpu.memory_space<vmem>>, vector<4x384xf32>
    tpu.vector_store %arg6[%c28, %c0_40], %50 {strides = array<i32>} : memref<36x384xf32, #tpu.memory_space<vmem>>, vector<4x384xf32>,
    %c0_41 = arith.constant 0 : index
    %c50 = arith.constant 50 : index
    %52 = vector.load %arg5[%c0_41, %c50] : memref<4x456xf32, #tpu.memory_space<vmem>>, vector<4x384xf32>
    %c32 = arith.constant 32 : index
    %c0_42 = arith.constant 0 : index
    %53 = vector.load %arg6[%c32, %c0_42] : memref<36x384xf32, #tpu.memory_space<vmem>>, vector<4x384xf32>
    tpu.vector_store %arg6[%c32, %c0_42], %52 {strides = array<i32>} : memref<36x384xf32, #tpu.memory_space<vmem>>, vector<4x384xf32>,
    %c0_43 = arith.constant 0 : index
    %c0_44 = arith.constant 0 : index
    %54 = vector.load %arg2[%c0_43, %c0_44] : memref<3x36xf32, #tpu.memory_space<vmem>>, vector<3x36xf32>
    %c0_45 = arith.constant 0 : index
    %c0_46 = arith.constant 0 : index
    %55 = vector.load %arg6[%c0_45, %c0_46] : memref<36x384xf32, #tpu.memory_space<vmem>>, vector<36x384xf32>
    %cst_47 = arith.constant dense<0.000000e+00> : vector<3x384xf32>
    %56 = tpu.matmul %54, %55, %cst_47 {dimension_numbers = #tpu.dot_dimension_numbers<[1], [0], [0], [1], [0, 0, 1, 1], [], []>, precision = #tpu.contract_precision<fp32>} : vector<3x36xf32>, vector<36x384xf32>, vector<3x384xf32> -> vector<3x384xf32>
    %c0_48 = arith.constant 0 : index
    %c0_49 = arith.constant 0 : index
    %57 = vector.load %arg3[%c0_48, %c0_49] : memref<3x1xf32, #tpu.memory_space<vmem>>, vector<3x1xf32>
    %58 = vector.broadcast %57 : vector<3x1xf32> to vector<3x384xf32>
    %59 = arith.addf %56, %58 : vector<3x384xf32>
    %60 = vector.extract_strided_slice %59 {offsets = [0, 0], sizes = [3, 16], strides = [1, 1]} : vector<3x384xf32> to vector<3x16xf32>
    %c0_50 = arith.constant 0 : index
    %c0_51 = arith.constant 0 : index
    %c0_52 = arith.constant 0 : index
    %61 = vector.load %arg4[%c0_50, %c0_51, %c0_52] : memref<1x3x256xf32, #tpu.memory_space<vmem>>, vector<1x3x16xf32>
    %62 = vector.shape_cast %61 : vector<1x3x16xf32> to vector<3x16xf32>
    %63 = vector.shape_cast %60 : vector<3x16xf32> to vector<1x3x16xf32>
    tpu.vector_store %arg4[%c0_50, %c0_51, %c0_52], %63 {strides = array<i32>} : memref<1x3x256xf32, #tpu.memory_space<vmem>>, vector<1x3x16xf32>,
    %64 = vector.extract_strided_slice %59 {offsets = [0, 24], sizes = [3, 16], strides = [1, 1]} : vector<3x384xf32> to vector<3x16xf32>
    %c0_53 = arith.constant 0 : index
    %c0_54 = arith.constant 0 : index
    %c16_55 = arith.constant 16 : index
    %65 = vector.load %arg4[%c0_53, %c0_54, %c16_55] : memref<1x3x256xf32, #tpu.memory_space<vmem>>, vector<1x3x16xf32>
    %66 = vector.shape_cast %65 : vector<1x3x16xf32> to vector<3x16xf32>
    %67 = vector.shape_cast %64 : vector<3x16xf32> to vector<1x3x16xf32>
    tpu.vector_store %arg4[%c0_53, %c0_54, %c16_55], %67 {strides = array<i32>} : memref<1x3x256xf32, #tpu.memory_space<vmem>>, vector<1x3x16xf32>,
    %68 = vector.extract_strided_slice %59 {offsets = [0, 48], sizes = [3, 16], strides = [1, 1]} : vector<3x384xf32> to vector<3x16xf32>
    %c0_56 = arith.constant 0 : index
    %c0_57 = arith.constant 0 : index
    %c32_58 = arith.constant 32 : index
    %69 = vector.load %arg4[%c0_56, %c0_57, %c32_58] : memref<1x3x256xf32, #tpu.memory_space<vmem>>, vector<1x3x16xf32>
    %70 = vector.shape_cast %69 : vector<1x3x16xf32> to vector<3x16xf32>
    %71 = vector.shape_cast %68 : vector<3x16xf32> to vector<1x3x16xf32>
    tpu.vector_store %arg4[%c0_56, %c0_57, %c32_58], %71 {strides = array<i32>} : memref<1x3x256xf32, #tpu.memory_space<vmem>>, vector<1x3x16xf32>,
    %72 = vector.extract_strided_slice %59 {offsets = [0, 72], sizes = [3, 16], strides = [1, 1]} : vector<3x384xf32> to vector<3x16xf32>
    %c0_59 = arith.constant 0 : index
    %c0_60 = arith.constant 0 : index
    %c48_61 = arith.constant 48 : index
    %73 = vector.load %arg4[%c0_59, %c0_60, %c48_61] : memref<1x3x256xf32, #tpu.memory_space<vmem>>, vector<1x3x16xf32>
    %74 = vector.shape_cast %73 : vector<1x3x16xf32> to vector<3x16xf32>
    %75 = vector.shape_cast %72 : vector<3x16xf32> to vector<1x3x16xf32>
    tpu.vector_store %arg4[%c0_59, %c0_60, %c48_61], %75 {strides = array<i32>} : memref<1x3x256xf32, #tpu.memory_space<vmem>>, vector<1x3x16xf32>,
    %76 = vector.extract_strided_slice %59 {offsets = [0, 96], sizes = [3, 16], strides = [1, 1]} : vector<3x384xf32> to vector<3x16xf32>
    %c0_62 = arith.constant 0 : index
    %c0_63 = arith.constant 0 : index
    %c64 = arith.constant 64 : index
    %77 = vector.load %arg4[%c0_62, %c0_63, %c64] : memref<1x3x256xf32, #tpu.memory_space<vmem>>, vector<1x3x16xf32>
    %78 = vector.shape_cast %77 : vector<1x3x16xf32> to vector<3x16xf32>
    %79 = vector.shape_cast %76 : vector<3x16xf32> to vector<1x3x16xf32>
    tpu.vector_store %arg4[%c0_62, %c0_63, %c64], %79 {strides = array<i32>} : memref<1x3x256xf32, #tpu.memory_space<vmem>>, vector<1x3x16xf32>,
    %80 = vector.extract_strided_slice %59 {offsets = [0, 120], sizes = [3, 16], strides = [1, 1]} : vector<3x384xf32> to vector<3x16xf32>
    %c0_64 = arith.constant 0 : index
    %c0_65 = arith.constant 0 : index
    %c80 = arith.constant 80 : index
    %81 = vector.load %arg4[%c0_64, %c0_65, %c80] : memref<1x3x256xf32, #tpu.memory_space<vmem>>, vector<1x3x16xf32>
    %82 = vector.shape_cast %81 : vector<1x3x16xf32> to vector<3x16xf32>
    %83 = vector.shape_cast %80 : vector<3x16xf32> to vector<1x3x16xf32>
    tpu.vector_store %arg4[%c0_64, %c0_65, %c80], %83 {strides = array<i32>} : memref<1x3x256xf32, #tpu.memory_space<vmem>>, vector<1x3x16xf32>,
    %84 = vector.extract_strided_slice %59 {offsets = [0, 144], sizes = [3, 16], strides = [1, 1]} : vector<3x384xf32> to vector<3x16xf32>
    %c0_66 = arith.constant 0 : index
    %c0_67 = arith.constant 0 : index
    %c96 = arith.constant 96 : index
    %85 = vector.load %arg4[%c0_66, %c0_67, %c96] : memref<1x3x256xf32, #tpu.memory_space<vmem>>, vector<1x3x16xf32>
    %86 = vector.shape_cast %85 : vector<1x3x16xf32> to vector<3x16xf32>
    %87 = vector.shape_cast %84 : vector<3x16xf32> to vector<1x3x16xf32>
    tpu.vector_store %arg4[%c0_66, %c0_67, %c96], %87 {strides = array<i32>} : memref<1x3x256xf32, #tpu.memory_space<vmem>>, vector<1x3x16xf32>,
    %88 = vector.extract_strided_slice %59 {offsets = [0, 168], sizes = [3, 16], strides = [1, 1]} : vector<3x384xf32> to vector<3x16xf32>
    %c0_68 = arith.constant 0 : index
    %c0_69 = arith.constant 0 : index
    %c112 = arith.constant 112 : index
    %89 = vector.load %arg4[%c0_68, %c0_69, %c112] : memref<1x3x256xf32, #tpu.memory_space<vmem>>, vector<1x3x16xf32>
    %90 = vector.shape_cast %89 : vector<1x3x16xf32> to vector<3x16xf32>
    %91 = vector.shape_cast %88 : vector<3x16xf32> to vector<1x3x16xf32>
    tpu.vector_store %arg4[%c0_68, %c0_69, %c112], %91 {strides = array<i32>} : memref<1x3x256xf32, #tpu.memory_space<vmem>>, vector<1x3x16xf32>,
    %92 = vector.extract_strided_slice %59 {offsets = [0, 192], sizes = [3, 16], strides = [1, 1]} : vector<3x384xf32> to vector<3x16xf32>
    %c0_70 = arith.constant 0 : index
    %c0_71 = arith.constant 0 : index
    %c128 = arith.constant 128 : index
    %93 = vector.load %arg4[%c0_70, %c0_71, %c128] : memref<1x3x256xf32, #tpu.memory_space<vmem>>, vector<1x3x16xf32>
    %94 = vector.shape_cast %93 : vector<1x3x16xf32> to vector<3x16xf32>
    %95 = vector.shape_cast %92 : vector<3x16xf32> to vector<1x3x16xf32>
    tpu.vector_store %arg4[%c0_70, %c0_71, %c128], %95 {strides = array<i32>} : memref<1x3x256xf32, #tpu.memory_space<vmem>>, vector<1x3x16xf32>,
    %96 = vector.extract_strided_slice %59 {offsets = [0, 216], sizes = [3, 16], strides = [1, 1]} : vector<3x384xf32> to vector<3x16xf32>
    %c0_72 = arith.constant 0 : index
    %c0_73 = arith.constant 0 : index
    %c144 = arith.constant 144 : index
    %97 = vector.load %arg4[%c0_72, %c0_73, %c144] : memref<1x3x256xf32, #tpu.memory_space<vmem>>, vector<1x3x16xf32>
    %98 = vector.shape_cast %97 : vector<1x3x16xf32> to vector<3x16xf32>
    %99 = vector.shape_cast %96 : vector<3x16xf32> to vector<1x3x16xf32>
    tpu.vector_store %arg4[%c0_72, %c0_73, %c144], %99 {strides = array<i32>} : memref<1x3x256xf32, #tpu.memory_space<vmem>>, vector<1x3x16xf32>,
    %100 = vector.extract_strided_slice %59 {offsets = [0, 240], sizes = [3, 16], strides = [1, 1]} : vector<3x384xf32> to vector<3x16xf32>
    %c0_74 = arith.constant 0 : index
    %c0_75 = arith.constant 0 : index
    %c160 = arith.constant 160 : index
    %101 = vector.load %arg4[%c0_74, %c0_75, %c160] : memref<1x3x256xf32, #tpu.memory_space<vmem>>, vector<1x3x16xf32>
    %102 = vector.shape_cast %101 : vector<1x3x16xf32> to vector<3x16xf32>
    %103 = vector.shape_cast %100 : vector<3x16xf32> to vector<1x3x16xf32>
    tpu.vector_store %arg4[%c0_74, %c0_75, %c160], %103 {strides = array<i32>} : memref<1x3x256xf32, #tpu.memory_space<vmem>>, vector<1x3x16xf32>,
    %104 = vector.extract_strided_slice %59 {offsets = [0, 264], sizes = [3, 16], strides = [1, 1]} : vector<3x384xf32> to vector<3x16xf32>
    %c0_76 = arith.constant 0 : index
    %c0_77 = arith.constant 0 : index
    %c176 = arith.constant 176 : index
    %105 = vector.load %arg4[%c0_76, %c0_77, %c176] : memref<1x3x256xf32, #tpu.memory_space<vmem>>, vector<1x3x16xf32>
    %106 = vector.shape_cast %105 : vector<1x3x16xf32> to vector<3x16xf32>
    %107 = vector.shape_cast %104 : vector<3x16xf32> to vector<1x3x16xf32>
    tpu.vector_store %arg4[%c0_76, %c0_77, %c176], %107 {strides = array<i32>} : memref<1x3x256xf32, #tpu.memory_space<vmem>>, vector<1x3x16xf32>,
    %108 = vector.extract_strided_slice %59 {offsets = [0, 288], sizes = [3, 16], strides = [1, 1]} : vector<3x384xf32> to vector<3x16xf32>
    %c0_78 = arith.constant 0 : index
    %c0_79 = arith.constant 0 : index
    %c192 = arith.constant 192 : index
    %109 = vector.load %arg4[%c0_78, %c0_79, %c192] : memref<1x3x256xf32, #tpu.memory_space<vmem>>, vector<1x3x16xf32>
    %110 = vector.shape_cast %109 : vector<1x3x16xf32> to vector<3x16xf32>
    %111 = vector.shape_cast %108 : vector<3x16xf32> to vector<1x3x16xf32>
    tpu.vector_store %arg4[%c0_78, %c0_79, %c192], %111 {strides = array<i32>} : memref<1x3x256xf32, #tpu.memory_space<vmem>>, vector<1x3x16xf32>,
    %112 = vector.extract_strided_slice %59 {offsets = [0, 312], sizes = [3, 16], strides = [1, 1]} : vector<3x384xf32> to vector<3x16xf32>
    %c0_80 = arith.constant 0 : index
    %c0_81 = arith.constant 0 : index
    %c208 = arith.constant 208 : index
    %113 = vector.load %arg4[%c0_80, %c0_81, %c208] : memref<1x3x256xf32, #tpu.memory_space<vmem>>, vector<1x3x16xf32>
    %114 = vector.shape_cast %113 : vector<1x3x16xf32> to vector<3x16xf32>
    %115 = vector.shape_cast %112 : vector<3x16xf32> to vector<1x3x16xf32>
    tpu.vector_store %arg4[%c0_80, %c0_81, %c208], %115 {strides = array<i32>} : memref<1x3x256xf32, #tpu.memory_space<vmem>>, vector<1x3x16xf32>,
    %116 = vector.extract_strided_slice %59 {offsets = [0, 336], sizes = [3, 16], strides = [1, 1]} : vector<3x384xf32> to vector<3x16xf32>
    %c0_82 = arith.constant 0 : index
    %c0_83 = arith.constant 0 : index
    %c224 = arith.constant 224 : index
    %117 = vector.load %arg4[%c0_82, %c0_83, %c224] : memref<1x3x256xf32, #tpu.memory_space<vmem>>, vector<1x3x16xf32>
    %118 = vector.shape_cast %117 : vector<1x3x16xf32> to vector<3x16xf32>
    %119 = vector.shape_cast %116 : vector<3x16xf32> to vector<1x3x16xf32>
    tpu.vector_store %arg4[%c0_82, %c0_83, %c224], %119 {strides = array<i32>} : memref<1x3x256xf32, #tpu.memory_space<vmem>>, vector<1x3x16xf32>,
    %120 = vector.extract_strided_slice %59 {offsets = [0, 360], sizes = [3, 16], strides = [1, 1]} : vector<3x384xf32> to vector<3x16xf32>
    %c0_84 = arith.constant 0 : index
    %c0_85 = arith.constant 0 : index
    %c240 = arith.constant 240 : index
    %121 = vector.load %arg4[%c0_84, %c0_85, %c240] : memref<1x3x256xf32, #tpu.memory_space<vmem>>, vector<1x3x16xf32>
    %122 = vector.shape_cast %121 : vector<1x3x16xf32> to vector<3x16xf32>
    %123 = vector.shape_cast %120 : vector<3x16xf32> to vector<1x3x16xf32>
    tpu.vector_store %arg4[%c0_84, %c0_85, %c240], %123 {strides = array<i32>} : memref<1x3x256xf32, #tpu.memory_space<vmem>>, vector<1x3x16xf32>,
    return
  }
  func.func @transform_0(%arg0: i32) -> (i32, i32, i32) {
    %c0_i32 = arith.constant 0 : i32
    %c0_i32_0 = arith.constant 0 : i32
    %c0_i32_1 = arith.constant 0 : i32
    return %arg0, %c0_i32, %c0_i32_0 : i32, i32, i32
  }
  func.func @transform_1(%arg0: i32) -> (i32, i32) {
    %c0_i32 = arith.constant 0 : i32
    %c0_i32_0 = arith.constant 0 : i32
    %c0_i32_1 = arith.constant 0 : i32
    return %c0_i32, %c0_i32_0 : i32, i32
  }
  func.func @transform_2(%arg0: i32) -> (i32, i32) {
    %c0_i32 = arith.constant 0 : i32
    %c0_i32_0 = arith.constant 0 : i32
    %c0_i32_1 = arith.constant 0 : i32
    return %c0_i32, %c0_i32_0 : i32, i32
  }
  func.func @transform_3(%arg0: i32) -> (i32, i32, i32) {
    %c0_i32 = arith.constant 0 : i32
    %c0_i32_0 = arith.constant 0 : i32
    %c0_i32_1 = arith.constant 0 : i32
    return %arg0, %c0_i32, %c0_i32_0 : i32, i32, i32
  }
}

</mosaic_0001>

<llo_original>
// kernel: tpu_custom_call.1
$region0: #{tpu_custom_call.1}
  #allocation0 [shape = 'u32[]', space=smem, size = 0x4, offset = 0x4, fixed_abs, tag = 'smem constant byte address 0x4 - core index']
  #allocation1 [shape = 'u32[144,128]{1,0:T(1,128)}', space=vmem, size = 0x12000, scoped, tag = 'internal scratch']
  #allocation2 [shape = 'f32[4,456]{1,0:T(4,128)}', space=vmem, size = 0x2000, scoped, tag = 'scratch operand']
  #allocation3 [shape = 'f32[36,384]{1,0:T(8,128)}', space=vmem, size = 0xf000, scoped, tag = 'scratch operand']
  %s0 = inlined_call_operand.hbm [shape: f32[2,4,256], index: 0, kind: input, shape index: {}]
  %s1 = inlined_call_operand.vmem [shape: f32[3,36], index: 1, kind: input, shape index: {}]
  %s2 = inlined_call_operand.vmem [shape: f32[3,1], index: 2, kind: input, shape index: {}]
  %s3 = inlined_call_operand.vmem [shape: f32[2,3,256], index: 3, kind: output, shape index: {}]
  %s4 = sld [smem:[#allocation0]]
  $region49: #{tpu_custom_call.1} parent=0
    _
  %s6 = ssub.s32 1, %s4
  %s7 = scalar_select 0, %s6, %s4
  $region1: #{tpu_custom_call.1} parent=0
    #allocation4 [shape = 'u8[8192]{0}', space=vmem, size = 0x2000, scoped, tag = 'input window, operand 0']
    #allocation5 [shape = 's32[2]{0}', space=sflag, size = 0x8, scoped, tag = 'scoped memory for tpu_custom_call.1']
    %8 = vsyncpa [#allocation5], 0
    %s9 = scalar_lea.sflag [#allocation5], 1
    %10 = vsyncpa %s9, 0
    loop: start=0, step=1, limit=4
    $region2: #{tpu_custom_call.1} parent=1 // loop_pre_header
      _
    $region3: #{tpu_custom_call.1} parent=1 // loop_header
      %s12 = sphi 0, %s16
      %p13 = scmp.ge.s32.totalorder %s12, 4
      %s22 = sphi 0, %s24
      %s25 = sphi 0, %s22
      %s26 = sphi 0, %s25
      %s42 = sphi 0, %s26
      %s46 = sphi 0, %s46
      %s48 = sphi 0, %s46
      %s49 = sphi 0, %s48
      %s63 = sphi 0, %s49
      %s67 = sphi 0, %s67
      %s69 = sphi 0, %s67
      %s70 = sphi 0, %s69
      %s84 = sphi 0, %s70
      %s90 = sphi 0, %s92
      %s93 = sphi 0, %s90
      %s94 = sphi 0, %s93
      %s110 = sphi 0, %s94
    $region4: #{tpu_custom_call.1} parent=1 // loop_header_branch
      %15 = sbr.rel (%p13) target = $region8
    $region5: #{tpu_custom_call.1} parent=1 // loop_body
      %s17 = ssub.s32 %s12, 1
      %s18 = ssub.s32 %s12, 2
      %s19 = sadd.s32 %s12, 1
      %s20 = ssub.s32 %s12, %s19
      %p21 = scmp.eq.s32.totalorder %s20, 0
      %s23 = sadd.s32 %s22, 1
      %s24 = scalar_select %p21, %s22, %s23
      %p27 = pneg %p21
      %p28 = scmp.eq.s32.totalorder %s12, 1
      %p29 = por %p27, %p28
      %p30 = scmp.ne.s32.totalorder %s22, %s25
      %p31 = scmp.eq.s32.totalorder %s12, 0
      %p32 = por %p30, %p31
      %p33 = scmp.ne.s32.totalorder %s22, %s25
      %p34 = scmp.eq.s32.totalorder %s17, 1
      %p35 = por %p33, %p34
      %p36 = scmp.ne.s32.totalorder %s25, %s26
      %p37 = scmp.eq.s32.totalorder %s17, 0
      %p38 = por %p36, %p37
      %p39 = scmp.ne.s32.totalorder %s25, %s26
      %p40 = scmp.eq.s32.totalorder %s18, 1
      %p41 = por %p39, %p40
      %p43 = scmp.ne.s32.totalorder %s26, %s42
      %p44 = scmp.eq.s32.totalorder %s18, 0
      %p45 = por %p43, %p44
      %s47 = sadd.s32 %s46, 1
      %p50 = scmp.eq.s32.totalorder %s12, 1
      %p51 = scmp.ne.s32.totalorder %s46, %s48
      %p52 = scmp.eq.s32.totalorder %s12, 0
      %p53 = por %p51, %p52
      %p54 = scmp.ne.s32.totalorder %s46, %s48
      %p55 = scmp.eq.s32.totalorder %s17, 1
      %p56 = por %p54, %p55
      %p57 = scmp.ne.s32.totalorder %s48, %s49
      %p58 = scmp.eq.s32.totalorder %s17, 0
      %p59 = por %p57, %p58
      %p60 = scmp.ne.s32.totalorder %s48, %s49
      %p61 = scmp.eq.s32.totalorder %s18, 1
      %p62 = por %p60, %p61
      %p64 = scmp.ne.s32.totalorder %s49, %s63
      %p65 = scmp.eq.s32.totalorder %s18, 0
      %p66 = por %p64, %p65
      %s68 = sadd.s32 %s67, 1
      %p71 = scmp.eq.s32.totalorder %s12, 1
      %p72 = scmp.ne.s32.totalorder %s67, %s69
      %p73 = scmp.eq.s32.totalorder %s12, 0
      %p74 = por %p72, %p73
      %p75 = scmp.ne.s32.totalorder %s67, %s69
      %p76 = scmp.eq.s32.totalorder %s17, 1
      %p77 = por %p75, %p76
      %p78 = scmp.ne.s32.totalorder %s69, %s70
      %p79 = scmp.eq.s32.totalorder %s17, 0
      %p80 = por %p78, %p79
      %p81 = scmp.ne.s32.totalorder %s69, %s70
      %p82 = scmp.eq.s32.totalorder %s18, 1
      %p83 = por %p81, %p82
      %p85 = scmp.ne.s32.totalorder %s70, %s84
      %p86 = scmp.eq.s32.totalorder %s18, 0
      %p87 = por %p85, %p86
      %s88 = ssub.s32 %s12, %s19
      %p89 = scmp.eq.s32.totalorder %s88, 0
      %s91 = sadd.s32 %s90, 1
      %s92 = scalar_select %p89, %s90, %s91
      %p95 = pneg %p89
      %p96 = scmp.eq.s32.totalorder %s12, 1
      %p97 = por %p95, %p96
      %p98 = scmp.ne.s32.totalorder %s90, %s93
      %p99 = scmp.eq.s32.totalorder %s12, 0
      %p100 = por %p98, %p99
      %p101 = scmp.ne.s32.totalorder %s90, %s93
      %p102 = scmp.eq.s32.totalorder %s17, 1
      %p103 = por %p101, %p102
      %p104 = scmp.ne.s32.totalorder %s93, %s94
      %p105 = scmp.eq.s32.totalorder %s17, 0
      %p106 = por %p104, %p105
      %p107 = scmp.ne.s32.totalorder %s93, %s94
      %p108 = scmp.eq.s32.totalorder %s18, 1
      %p109 = por %p107, %p108
      %p111 = scmp.ne.s32.totalorder %s94, %s110
      %p112 = scmp.eq.s32.totalorder %s18, 0
      %p113 = por %p111, %p112
      %p114 = scmp.le.s32.totalorder 1, %s12
      %p115 = scmp.lt.s32.totalorder %s12, 3
      %p116 = pnand %p114, %p115
      %p117 = pneg %p116
      // Predicated region
      $region9: #{tpu_custom_call.1} parent=5 // pred_check
        _
      $region10: #{tpu_custom_call.1} parent=5 // pred_check_branch
        %119 = sbr.rel (%p116) target = $region12
      $region11: #{tpu_custom_call.1} parent=5 // pred_region
        %s120 = ssub.s32 %s12, 1
        // Predicated region
        $region13: #{tpu_custom_call.1} parent=11 // pred_check
          %p121 = pneg %p59
        $region14: #{tpu_custom_call.1} parent=11 // pred_check_branch
          %123 = sbr.rel (%p121) target = $region16
        $region15: #{tpu_custom_call.1} parent=11 // pred_region
          _
        $region16: #{tpu_custom_call.1} parent=11 // pred_fallthru
          _
        // Predicated region
        $region17: #{tpu_custom_call.1} parent=11 // pred_check
          %p124 = pneg %p80
        $region18: #{tpu_custom_call.1} parent=11 // pred_check_branch
          %126 = sbr.rel (%p124) target = $region20
        $region19: #{tpu_custom_call.1} parent=11 // pred_region
          _
        $region20: #{tpu_custom_call.1} parent=11 // pred_fallthru
          _
      $region12: #{tpu_custom_call.1} parent=5 // pred_fallthru
        _
      %p127 = scmp.lt.s32.totalorder %s12, 2
      // Predicated region
      $region21: #{tpu_custom_call.1} parent=5 // pred_check
        %p128 = pneg %p127
      $region22: #{tpu_custom_call.1} parent=5 // pred_check_branch
        %130 = sbr.rel (%p128) target = $region24
      $region23: #{tpu_custom_call.1} parent=5 // pred_region
        // Predicated region
        $region25: #{tpu_custom_call.1} parent=23 // pred_check
          %p131 = pneg %p32
        $region26: #{tpu_custom_call.1} parent=23 // pred_check_branch
          %133 = sbr.rel (%p131) target = $region28
        $region27: #{tpu_custom_call.1} parent=23 // pred_region
          %s134 = sand.u32 %s22, 1
          %s135 = scalar_lea.sflag [#allocation5], %s134
          %s136 = sand.u32 %s22, 1
          %s137 = smul.addr %s136, 8
          %s138 = scalar_lea.vmem [#allocation4], %s137
          %s140 = ssub.s32 128, 128
          %141 = vsyncadd %s135, %s140
          %s142 = smul.addr %s12, 2
          %s143 = smul.addr %s142, 64
          %s144 = scalar_lea.hbm %s0, %s143
          %s146 = sshll.u32 %s138, 4
          %s147 = int_to_ptr.vmem [resolvable:$true] %s146
          %149 = dma.hbm_to_vmem [thread:$0]  %s144, 128, %s147, %s135
        $region28: #{tpu_custom_call.1} parent=23 // pred_fallthru
          _
      $region24: #{tpu_custom_call.1} parent=5 // pred_fallthru
        _
      %p150 = scmp.le.s32.totalorder 1, %s12
      %p151 = scmp.lt.s32.totalorder %s12, 3
      %p152 = pnand %p150, %p151
      %p153 = pneg %p152
      // Predicated region
      $region29: #{tpu_custom_call.1} parent=5 // pred_check
        _
      $region30: #{tpu_custom_call.1} parent=5 // pred_check_branch
        %155 = sbr.rel (%p152) target = $region32
      $region31: #{tpu_custom_call.1} parent=5 // pred_region
        %s156 = ssub.s32 %s12, 1
        %s157 = sand.u32 %s25, 1
        %s158 = scalar_lea.sflag [#allocation5], %s157
        %s159 = sand.u32 %s25, 1
        %s160 = smul.addr %s159, 8
        %s161 = scalar_lea.vmem [#allocation4], %s160
        // Predicated region
        $region33: #{tpu_custom_call.1} parent=31 // pred_check
          %p162 = pneg %p38
        $region34: #{tpu_custom_call.1} parent=31 // pred_check_branch
          %164 = sbr.rel (%p162) target = $region36
        $region35: #{tpu_custom_call.1} parent=31 // pred_region
          %165 = dma.done %s158, 128
        $region36: #{tpu_custom_call.1} parent=31 // pred_fallthru
          _
        %s166 = sand.u32 %s25, 1
        %s167 = scalar_lea.sflag [#allocation5], %s166
        %s168 = sand.u32 %s25, 1
        %s169 = smul.addr %s168, 8
        %s170 = scalar_lea.vmem [#allocation4], %s169
        %p171 = pneg %p38
        %p172 = pneg %p35
        %p173 = pneg %p59
        %p174 = pneg %p56
        %p175 = pneg %p80
        %p176 = pneg %p77
        %p177 = pneg %p106
        %p178 = pneg %p103
        %p179 = scmp.lt.s32.totalorder %s17, 1
        %s180 = scalar_select %p179, %s17, 1
        %s181 = smul.addr %s180, 2
        %s182 = smul.addr %s181, 4
        %s183 = scalar_lea.vmem %s3, %s182
        %p184 = scmp.lt.s32.totalorder %s17, 1
        %s185 = scalar_select %p184, %s17, 1
        %s186 = smul.addr %s185, 2
        %s187 = smul.addr %s186, 4
        %s188 = scalar_lea.vmem %s3, %s187
        %189 = vst [vmem:[#allocation2] sm:$0xff] 0.0
        %vm190 = vcmask 1043456
        %vm191 = vcmask 588804
        %vm192 = vmor %vm191, %vm190
        %193 = vst.msk [vmem:[#allocation2 + $0x8] sm:$0xff] %vm192, 0.0
        %v194 = vld [vmem:[%s161] sm:$0xff]
        %196 = vrot.lane.b32.xlu0 %v194, 25
        %v197 = vpop.permute.xlu0 %196
        %vm199 = vcmask 330952
        %200 = vst.msk [vmem:[#allocation2] sm:$0xf] %vm199, %v197
        %201 = vrot.lane.b32.xlu0 %v194, 33
        %v202 = vpop.permute.xlu0 %201
        %vm204 = vcmask 527752
        %205 = vst.msk [vmem:[#allocation2] sm:$0xf] %vm204, %v202
        %206 = vrot.lane.b32.xlu0 %v194, 41
        %v207 = vpop.permute.xlu0 %206
        %vm209 = vcmask 724552
        %210 = vst.msk [vmem:[#allocation2] sm:$0xf] %vm209, %v207
        %211 = vrot.lane.b32.xlu0 %v194, 49
        %v212 = vpop.permute.xlu0 %211
        %vm214 = vcmask 921352
        %215 = vst.msk [vmem:[#allocation2] sm:$0xf] %vm214, %v212
        %216 = vrot.lane.b32.xlu0 %v194, 57
        %v217 = vpop.permute.xlu0 %216
        %v218 = vrot.slane %v217, 4
        %vm219 = vcmask 465920
        %v220 = vsel %vm219, %v218, %v217
        %vm222 = vcmask 1044424
        %vm223 = vcmask 72708
        %vm224 = vmor %vm223, %vm222
        %225 = vst.msk [vmem:[#allocation2] sm:$0xff] %vm224, %v220
        %226 = vrot.lane.b32.xlu0 %v194, 65
        %v227 = vpop.permute.xlu0 %226
        %vm229 = vcmask 265352
        %230 = vst.msk [vmem:[#allocation2 + $0x4] sm:$0xf] %vm229, %v227
        %231 = vrot.lane.b32.xlu0 %v194, 73
        %v232 = vpop.permute.xlu0 %231
        %vm234 = vcmask 462152
        %235 = vst.msk [vmem:[#allocation2 + $0x4] sm:$0xf] %vm234, %v232
        %236 = vrot.lane.b32.xlu0 %v194, 81
        %v237 = vpop.permute.xlu0 %236
        %vm239 = vcmask 658952
        %240 = vst.msk [vmem:[#allocation2 + $0x4] sm:$0xf] %vm239, %v237
        %241 = vrot.lane.b32.xlu0 %v194, 89
        %v242 = vpop.permute.xlu0 %241
        %v243 = vrot.slane %v242, 4
        %vm244 = vcmask 728064
        %v245 = vsel %vm244, %v242, %v243
        %vm247 = vcmask 855752
        %248 = vst.msk [vmem:[#allocation2 + $0x4] sm:$0xf] %vm247, %v245
        %249 = vrot.lane.b32.xlu0 %v194, 97
        %v250 = vpop.permute.xlu0 %249
        %v251 = vrot.slane %v250, 4
        %vm252 = vcmask 793600
        %v253 = vsel %vm252, %v250, %v251
        %vm255 = vcmask 1044360
        %vm256 = vcmask 7172
        %vm257 = vmor %vm256, %vm255
        %258 = vst.msk [vmem:[#allocation2 + $0x4] sm:$0xff] %vm257, %v253
        %259 = vrot.lane.b32.xlu0 %v194, 105
        %v260 = vpop.permute.xlu0 %259
        %v261 = vrot.slane %v260, 4
        %vm263 = vcmask 199752
        %264 = vst.msk [vmem:[#allocation2 + $0x8] sm:$0xf] %vm263, %v261
        %265 = vrot.lane.b32.xlu0 %v194, 113
        %v266 = vpop.permute.xlu0 %265
        %v267 = vrot.slane %v266, 4
        %vm269 = vcmask 396552
        %270 = vst.msk [vmem:[#allocation2 + $0x8] sm:$0xf] %vm269, %v267
        %271 = vrot.lane.b32.xlu0 %v194, 121
        %v272 = vpop.permute.xlu0 %271
        %v273 = vrot.slane %v272, 4
        %vm275 = vcmask 593352
        %276 = vst.msk [vmem:[#allocation2 + $0x8] sm:$0xf] %vm275, %v273
        %277 = vrot.lane.b32.xlu0 %v194, 1
        %v278 = vpop.permute.xlu0 %277
        %v279 = vrot.slane %v278, 4
        %vm280 = vcmask 7168
        %v281 = vsel %vm280, %v278, %v279
        %vm283 = vcmask 790152
        %284 = vst.msk [vmem:[#allocation2 + $0x8] sm:$0xf] %vm283, %v281
        %285 = vrot.lane.b32.xlu0 %v194, 9
        %v286 = vpop.permute.xlu0 %285
        %v287 = vrot.slane %v286, 4
        %vm288 = vcmask 72704
        %v289 = vsel %vm288, %v286, %v287
        %vm291 = vcmask 986952
        %292 = vst.msk [vmem:[#allocation2 + $0x8] sm:$0xf] %vm291, %v289
        %293 = vrot.lane.b32.xlu0 %v194, 17
        %v294 = vpop.permute.xlu0 %293
        %v295 = vrot.slane %v294, 4
        %vm297 = vcmask 134152
        %298 = vst.msk [vmem:[#allocation2 + $0xc] sm:$0xf] %vm297, %v295
        %v299 = vld [vmem:[#allocation2] sm:$0xff]
        %v300 = vld [vmem:[#allocation2 + $0x8] sm:$0xf]
        %v302 = vcombine.high %v299, %v299
        %304 = vst [vmem:[#allocation3] sm:$0xf] %v299
        %305 = vst [vmem:[#allocation3 + $0x8] sm:$0xf] %v302
        %306 = vst [vmem:[#allocation3 + $0x10] sm:$0xf] %v300
        %v307 = vld [vmem:[#allocation2] sm:$0xff]
        %v308 = vld [vmem:[#allocation2 + $0x8] sm:$0xff]
        %v311 = vcombine.low %v307, %v307
        %v312 = vcombine.low %v308, %v308
        %313 = vrot.lane.b32.xlu0 %v311, 127
        %v314 = vpop.permute.xlu0 %313
        %315 = vrot.lane.b32.xlu0 %v307, 127
        %v316 = vpop.permute.xlu0 %315
        %317 = vrot.lane.b32.xlu0 %v312, 127
        %v318 = vpop.permute.xlu0 %317
        %319 = vrot.lane.b32.xlu0 %v308, 127
        %v320 = vpop.permute.xlu0 %319
        %vm321 = vcmask 1039360
        %v322 = vsel %vm321, %v314, %v316
        %v323 = vsel %vm321, %v316, %v318
        %v324 = vsel %vm321, %v318, %v320
        %328 = vst [vmem:[#allocation3] sm:$0xf0] %v322
        %329 = vst [vmem:[#allocation3 + $0x8] sm:$0xf0] %v323
        %330 = vst [vmem:[#allocation3 + $0x10] sm:$0xf0] %v324
        %v331 = vld [vmem:[#allocation2] sm:$0xff]
        %v332 = vld [vmem:[#allocation2 + $0x8] sm:$0xff]
        %v335 = vcombine.high %v331, %v331
        %v336 = vcombine.high %v332, %v332
        %337 = vrot.lane.b32.xlu0 %v331, 126
        %v338 = vpop.permute.xlu0 %337
        %339 = vrot.lane.b32.xlu0 %v335, 126
        %v340 = vpop.permute.xlu0 %339
        %341 = vrot.lane.b32.xlu0 %v332, 126
        %v342 = vpop.permute.xlu0 %341
        %343 = vrot.lane.b32.xlu0 %v336, 126
        %v344 = vpop.permute.xlu0 %343
        %vm345 = vcmask 1031168
        %v346 = vsel %vm345, %v338, %v340
        %v347 = vsel %vm345, %v340, %v342
        %v348 = vsel %vm345, %v342, %v344
        %352 = vst [vmem:[#allocation3 + $0x18] sm:$0xf] %v346
        %353 = vst [vmem:[#allocation3 + $0x20] sm:$0xf] %v347
        %354 = vst [vmem:[#allocation3 + $0x28] sm:$0xf] %v348
        %v355 = vld [vmem:[#allocation2] sm:$0xff]
        %v356 = vld [vmem:[#allocation2 + $0x8] sm:$0xff]
        %v359 = vcombine.low %v355, %v355
        %v360 = vcombine.low %v356, %v356
        %361 = vrot.lane.b32.xlu0 %v359, 104
        %v362 = vpop.permute.xlu0 %361
        %363 = vrot.lane.b32.xlu0 %v355, 104
        %v364 = vpop.permute.xlu0 %363
        %365 = vrot.lane.b32.xlu0 %v360, 104
        %v366 = vpop.permute.xlu0 %365
        %367 = vrot.lane.b32.xlu0 %v356, 104
        %v368 = vpop.permute.xlu0 %367
        %vm369 = vcmask 850944
        %v370 = vsel %vm369, %v362, %v364
        %v371 = vsel %vm369, %v364, %v366
        %v372 = vsel %vm369, %v366, %v368
        %376 = vst [vmem:[#allocation3 + $0x18] sm:$0xf0] %v370
        %377 = vst [vmem:[#allocation3 + $0x20] sm:$0xf0] %v371
        %378 = vst [vmem:[#allocation3 + $0x28] sm:$0xf0] %v372
        %v379 = vld [vmem:[#allocation2] sm:$0xff]
        %v380 = vld [vmem:[#allocation2 + $0x8] sm:$0xff]
        %v383 = vcombine.high %v379, %v379
        %v384 = vcombine.high %v380, %v380
        %385 = vrot.lane.b32.xlu0 %v379, 103
        %v386 = vpop.permute.xlu0 %385
        %387 = vrot.lane.b32.xlu0 %v383, 103
        %v388 = vpop.permute.xlu0 %387
        %389 = vrot.lane.b32.xlu0 %v380, 103
        %v390 = vpop.permute.xlu0 %389
        %391 = vrot.lane.b32.xlu0 %v384, 103
        %v392 = vpop.permute.xlu0 %391
        %vm393 = vcmask 842752
        %v394 = vsel %vm393, %v386, %v388
        %v395 = vsel %vm393, %v388, %v390
        %v396 = vsel %vm393, %v390, %v392
        %400 = vst [vmem:[#allocation3 + $0x30] sm:$0xf] %v394
        %401 = vst [vmem:[#allocation3 + $0x38] sm:$0xf] %v395
        %402 = vst [vmem:[#allocation3 + $0x40] sm:$0xf] %v396
        %v403 = vld [vmem:[#allocation2] sm:$0xff]
        %v404 = vld [vmem:[#allocation2 + $0x8] sm:$0xff]
        %v407 = vcombine.low %v403, %v403
        %v408 = vcombine.low %v404, %v404
        %409 = vrot.lane.b32.xlu0 %v407, 102
        %v410 = vpop.permute.xlu0 %409
        %411 = vrot.lane.b32.xlu0 %v403, 102
        %v412 = vpop.permute.xlu0 %411
        %413 = vrot.lane.b32.xlu0 %v408, 102
        %v414 = vpop.permute.xlu0 %413
        %415 = vrot.lane.b32.xlu0 %v404, 102
        %v416 = vpop.permute.xlu0 %415
        %vm417 = vcmask 834560
        %v418 = vsel %vm417, %v410, %v412
        %v419 = vsel %vm417, %v412, %v414
        %v420 = vsel %vm417, %v414, %v416
        %424 = vst [vmem:[#allocation3 + $0x30] sm:$0xf0] %v418
        %425 = vst [vmem:[#allocation3 + $0x38] sm:$0xf0] %v419
        %426 = vst [vmem:[#allocation3 + $0x40] sm:$0xf0] %v420
        %v427 = vld [vmem:[#allocation2] sm:$0xff]
        %v428 = vld [vmem:[#allocation2 + $0x8] sm:$0xff]
        %v431 = vcombine.high %v427, %v427
        %v432 = vcombine.high %v428, %v428
        %433 = vrot.lane.b32.xlu0 %v427, 80
        %v434 = vpop.permute.xlu0 %433
        %435 = vrot.lane.b32.xlu0 %v431, 80
        %v436 = vpop.permute.xlu0 %435
        %437 = vrot.lane.b32.xlu0 %v428, 80
        %v438 = vpop.permute.xlu0 %437
        %439 = vrot.lane.b32.xlu0 %v432, 80
        %v440 = vpop.permute.xlu0 %439
        %vm441 = vcmask 654336
        %v442 = vsel %vm441, %v434, %v436
        %v443 = vsel %vm441, %v436, %v438
        %v444 = vsel %vm441, %v438, %v440
        %448 = vst [vmem:[#allocation3 + $0x48] sm:$0xf] %v442
        %449 = vst [vmem:[#allocation3 + $0x50] sm:$0xf] %v443
        %450 = vst [vmem:[#allocation3 + $0x58] sm:$0xf] %v444
        %v451 = vld [vmem:[#allocation2] sm:$0xff]
        %v452 = vld [vmem:[#allocation2 + $0x8] sm:$0xff]
        %v455 = vcombine.low %v451, %v451
        %v456 = vcombine.low %v452, %v452
        %457 = vrot.lane.b32.xlu0 %v455, 79
        %v458 = vpop.permute.xlu0 %457
        %459 = vrot.lane.b32.xlu0 %v451, 79
        %v460 = vpop.permute.xlu0 %459
        %461 = vrot.lane.b32.xlu0 %v456, 79
        %v462 = vpop.permute.xlu0 %461
        %463 = vrot.lane.b32.xlu0 %v452, 79
        %v464 = vpop.permute.xlu0 %463
        %vm465 = vcmask 646144
        %v466 = vsel %vm465, %v458, %v460
        %v467 = vsel %vm465, %v460, %v462
        %v468 = vsel %vm465, %v462, %v464
        %472 = vst [vmem:[#allocation3 + $0x48] sm:$0xf0] %v466
        %473 = vst [vmem:[#allocation3 + $0x50] sm:$0xf0] %v467
        %474 = vst [vmem:[#allocation3 + $0x58] sm:$0xf0] %v468
        %v475 = vld [vmem:[#allocation2] sm:$0xff]
        %v476 = vld [vmem:[#allocation2 + $0x8] sm:$0xff]
        %v479 = vcombine.high %v475, %v475
        %v480 = vcombine.high %v476, %v476
        %481 = vrot.lane.b32.xlu0 %v475, 78
        %v482 = vpop.permute.xlu0 %481
        %483 = vrot.lane.b32.xlu0 %v479, 78
        %v484 = vpop.permute.xlu0 %483
        %485 = vrot.lane.b32.xlu0 %v476, 78
        %v486 = vpop.permute.xlu0 %485
        %487 = vrot.lane.b32.xlu0 %v480, 78
        %v488 = vpop.permute.xlu0 %487
        %vm489 = vcmask 637952
        %v490 = vsel %vm489, %v482, %v484
        %v491 = vsel %vm489, %v484, %v486
        %v492 = vsel %vm489, %v486, %v488
        %496 = vst [vmem:[#allocation3 + $0x60] sm:$0xf] %v490
        %497 = vst [vmem:[#allocation3 + $0x68] sm:$0xf] %v491
        %498 = vst [vmem:[#allocation3 + $0x70] sm:$0xf] %v492
        %v499 = vld [vmem:[%s1] sm:$0x7]
        %v500 = vld [vmem:[#allocation3] sm:$0xff]
        %v501 = vld [vmem:[#allocation3 + $0x8] sm:$0xff]
        %v502 = vld [vmem:[#allocation3 + $0x10] sm:$0xff]
        %v503 = vld [vmem:[#allocation3 + $0x18] sm:$0xff]
        %v504 = vld [vmem:[#allocation3 + $0x20] sm:$0xff]
        %v505 = vld [vmem:[#allocation3 + $0x28] sm:$0xff]
        %v506 = vld [vmem:[#allocation3 + $0x30] sm:$0xff]
        %v507 = vld [vmem:[#allocation3 + $0x38] sm:$0xff]
        %v508 = vld [vmem:[#allocation3 + $0x40] sm:$0xff]
        %v509 = vld [vmem:[#allocation3 + $0x48] sm:$0xff]
        %v510 = vld [vmem:[#allocation3 + $0x50] sm:$0xff]
        %v511 = vld [vmem:[#allocation3 + $0x58] sm:$0xff]
        %v512 = vld [vmem:[#allocation3 + $0x60] sm:$0xf]
        %v513 = vld [vmem:[#allocation3 + $0x68] sm:$0xf]
        %v514 = vld [vmem:[#allocation3 + $0x70] sm:$0xf]
        %v515 = vld [vmem:[%s2] sm:$0x7]
        %517 = vset.pattern.permute.xlu0 0
        %518 = vperm.xlu0 %517, %v515
        %v519 = vpop.permute.xlu0 %518
        %vm521 = vcmask 293888
        %v523 = vsel %vm521, %v499, 0
        %v526 = vsel %vm190, %v512, 0
        %v529 = vsel %vm190, %v513, 0
        %v532 = vsel %vm190, %v514, 0
        %v534 = vand.u32 %v501, 4294901760
        %535 = vmatprep.subr.mxu0 %v534
        %v536 = vand.u32 %v500, 4294901760
        %537 = vmatpush1.msra.mxu0 %v536
        %v538 = vand.u32 %v504, 4294901760
        %539 = vmatprep.subr.mxu0 %v538
        %v540 = vand.u32 %v503, 4294901760
        %541 = vmatpush1.msra.mxu0 %v540
        %v542 = vand.u32 %v507, 4294901760
        %543 = vmatprep.subr.mxu0 %v542
        %v544 = vand.u32 %v506, 4294901760
        %545 = vmatpush1.msra.mxu0 %v544
        %v546 = vand.u32 %v510, 4294901760
        %547 = vmatprep.subr.mxu0 %v546
        %v548 = vand.u32 %v509, 4294901760
        %549 = vmatpush1.msra.mxu0 %v548
        %v550 = vand.u32 %v529, 4294901760
        %551 = vmatprep.subr.mxu0 %v550
        %v552 = vand.u32 %v526, 4294901760
        %553 = vmatpush1.msra.mxu0 %v552
        %554 = vmatprep.subr.mxu0 0.0
        %555 = vmatpush1.msra.mxu0 0.0
        %556 = vmatprep.subr.mxu0 0.0
        %557 = vmatpush1.msra.mxu0 0.0
        %558 = vmatprep.subr.mxu0 0.0
        %559 = vmatpush1.msra.mxu0 0.0
        %560 = vmatprep.subr.mxu0 0.0
        %561 = vmatpush1.msra.mxu0 0.0
        %562 = vmatprep.subr.mxu0 0.0
        %563 = vmatpush1.msra.mxu0 0.0
        %564 = vmatprep.subr.mxu0 0.0
        %565 = vmatpush1.msra.mxu0 0.0
        %566 = vmatprep.subr.mxu0 0.0
        %567 = vmatpush1.msra.mxu0 0.0
        %568 = vmatprep.subr.mxu0 0.0
        %569 = vmatpush1.msra.mxu0 0.0
        %570 = vmatprep.subr.mxu0 0.0
        %571 = vmatpush1.msra.mxu0 0.0
        %572 = vmatprep.subr.mxu0 0.0
        %573 = vmatpush1.msra.mxu0 0.0
        %574 = vmatprep.subr.mxu0 0.0
        %575 = vmatpush1.msra.mxu0 0.0
        %576 = vmatprep.subr.mxu0 0.0
        %577 = vmatpush1.msra.mxu0 0.0
        %578 = vmatprep.subr.mxu0 0.0
        %579 = vmatpush1.msra.mxu0 0.0
        %580 = vmatprep.subr.mxu0 0.0
        %581 = vmatpush1.msra.mxu0 0.0
        %582 = vmatprep.subr.mxu0 0.0
        %583 = vmatpush1.msra.mxu0 0.0
        %584 = vmatprep.subr.mxu0 0.0
        %585 = vmatpush1.msra.mxu0 0.0
        %586 = vmatprep.subr.mxu0 0.0
        %587 = vmatpush1.msra.mxu0 0.0
        %588 = vmatprep.subr.mxu0 0.0
        %589 = vmatpush1.msra.mxu0 0.0
        %590 = vmatprep.subr.mxu0 0.0
        %591 = vmatpush1.msra.mxu0 0.0
        %592 = vmatprep.subr.mxu0 0.0
        %593 = vmatpush1.msra.mxu0 0.0
        %594 = vmatprep.subr.mxu0 0.0
        %595 = vmatpush1.msra.mxu0 0.0
        %596 = vmatprep.subr.mxu0 0.0
        %597 = vmatpush1.msra.mxu0 0.0
        %598 = vmatprep.subr.mxu0 0.0
        %599 = vmatpush1.msra.mxu0 0.0
        %600 = vmatprep.subr.mxu0 0.0
        %601 = vmatpush1.msra.mxu0 0.0
        %602 = vmatprep.subr.mxu0 0.0
        %603 = vmatpush1.msra.mxu0 0.0
        %604 = vmatprep.subr.mxu0 0.0
        %605 = vmatpush1.msra.mxu0 0.0
        %606 = vmatprep.subr.mxu0 0.0
        %607 = vmatpush1.msra.mxu0 0.0
        %608 = vmatprep.mubr.f32.mxu0 0.0
        %v609 = vand.u32 %v523, 4294901760
        %v610 = vsub.f32 %v523, %v609
        %v611 = vand.u32 %v610, 4294901760
        %v612 = vsub.f32 %v610, %v611
        %v613 = vand.u32 %v612, 4294901760
        %614 = vmatmul.mubr.f32.gmra.mrb[0].mxu0 %v613
        %v615 = vpop.f32.mrb[0].mxu0
        %v616 = vadd.f32 %v519, %v615
        %v617 = vpop.f32.mrb[0].mxu0
        %v618 = vadd.f32 %v519, %v617
        %619 = vdwg.mxu0
        %v620 = vand.u32 %v501, 4294901760
        %v621 = vsub.f32 %v501, %v620
        %v622 = vand.u32 %v621, 4294901760
        %v623 = vsub.f32 %v621, %v622
        %v624 = vand.u32 %v623, 4294901760
        %625 = vmatprep.subr.mxu0 %v624
        %v626 = vand.u32 %v500, 4294901760
        %v627 = vsub.f32 %v500, %v626
        %v628 = vand.u32 %v627, 4294901760
        %v629 = vsub.f32 %v627, %v628
        %v630 = vand.u32 %v629, 4294901760
        %631 = vmatpush1.msra.mxu0 %v630
        %v632 = vand.u32 %v504, 4294901760
        %v633 = vsub.f32 %v504, %v632
        %v634 = vand.u32 %v633, 4294901760
        %v635 = vsub.f32 %v633, %v634
        %v636 = vand.u32 %v635, 4294901760
        %637 = vmatprep.subr.mxu0 %v636
        %v638 = vand.u32 %v503, 4294901760
        %v639 = vsub.f32 %v503, %v638
        %v640 = vand.u32 %v639, 4294901760
        %v641 = vsub.f32 %v639, %v640
        %v642 = vand.u32 %v641, 4294901760
        %643 = vmatpush1.msra.mxu0 %v642
        %v644 = vand.u32 %v507, 4294901760
        %v645 = vsub.f32 %v507, %v644
        %v646 = vand.u32 %v645, 4294901760
        %v647 = vsub.f32 %v645, %v646
        %v648 = vand.u32 %v647, 4294901760
        %649 = vmatprep.subr.mxu0 %v648
        %v650 = vand.u32 %v506, 4294901760
        %v651 = vsub.f32 %v506, %v650
        %v652 = vand.u32 %v651, 4294901760
        %v653 = vsub.f32 %v651, %v652
        %v654 = vand.u32 %v653, 4294901760
        %655 = vmatpush1.msra.mxu0 %v654
        %v656 = vand.u32 %v510, 4294901760
        %v657 = vsub.f32 %v510, %v656
        %v658 = vand.u32 %v657, 4294901760
        %v659 = vsub.f32 %v657, %v658
        %v660 = vand.u32 %v659, 4294901760
        %661 = vmatprep.subr.mxu0 %v660
        %v662 = vand.u32 %v509, 4294901760
        %v663 = vsub.f32 %v509, %v662
        %v664 = vand.u32 %v663, 4294901760
        %v665 = vsub.f32 %v663, %v664
        %v666 = vand.u32 %v665, 4294901760
        %667 = vmatpush1.msra.mxu0 %v666
        %v668 = vand.u32 %v529, 4294901760
        %v669 = vsub.f32 %v529, %v668
        %v670 = vand.u32 %v669, 4294901760
        %v671 = vsub.f32 %v669, %v670
        %v672 = vand.u32 %v671, 4294901760
        %673 = vmatprep.subr.mxu0 %v672
        %v674 = vand.u32 %v526, 4294901760
        %v675 = vsub.f32 %v526, %v674
        %v676 = vand.u32 %v675, 4294901760
        %v677 = vsub.f32 %v675, %v676
        %v678 = vand.u32 %v677, 4294901760
        %679 = vmatpush1.msra.mxu0 %v678
        %680 = vmatprep.subr.mxu0 0.0
        %681 = vmatpush1.msra.mxu0 0.0
        %682 = vmatprep.subr.mxu0 0.0
        %683 = vmatpush1.msra.mxu0 0.0
        %684 = vmatprep.subr.mxu0 0.0
        %685 = vmatpush1.msra.mxu0 0.0
        %686 = vmatprep.subr.mxu0 0.0
        %687 = vmatpush1.msra.mxu0 0.0
        %688 = vmatprep.subr.mxu0 0.0
        %689 = vmatpush1.msra.mxu0 0.0
        %690 = vmatprep.subr.mxu0 0.0
        %691 = vmatpush1.msra.mxu0 0.0
        %692 = vmatprep.subr.mxu0 0.0
        %693 = vmatpush1.msra.mxu0 0.0
        %694 = vmatprep.subr.mxu0 0.0
        %695 = vmatpush1.msra.mxu0 0.0
        %696 = vmatprep.subr.mxu0 0.0
        %697 = vmatpush1.msra.mxu0 0.0
        %698 = vmatprep.subr.mxu0 0.0
        %699 = vmatpush1.msra.mxu0 0.0
        %700 = vmatprep.subr.mxu0 0.0
        %701 = vmatpush1.msra.mxu0 0.0
        %702 = vmatprep.subr.mxu0 0.0
        %703 = vmatpush1.msra.mxu0 0.0
        %704 = vmatprep.subr.mxu0 0.0
        %705 = vmatpush1.msra.mxu0 0.0
        %706 = vmatprep.subr.mxu0 0.0
        %707 = vmatpush1.msra.mxu0 0.0
        %708 = vmatprep.subr.mxu0 0.0
        %709 = vmatpush1.msra.mxu0 0.0
        %710 = vmatprep.subr.mxu0 0.0
        %711 = vmatpush1.msra.mxu0 0.0
        %712 = vmatprep.subr.mxu0 0.0
        %713 = vmatpush1.msra.mxu0 0.0
        %714 = vmatprep.subr.mxu0 0.0
        %715 = vmatpush1.msra.mxu0 0.0
        %716 = vmatprep.subr.mxu0 0.0
        %717 = vmatpush1.msra.mxu0 0.0
        %718 = vmatprep.subr.mxu0 0.0
        %719 = vmatpush1.msra.mxu0 0.0
        %720 = vmatprep.subr.mxu0 0.0
        %721 = vmatpush1.msra.mxu0 0.0
        %722 = vmatprep.subr.mxu0 0.0
        %723 = vmatpush1.msra.mxu0 0.0
        %724 = vmatprep.subr.mxu0 0.0
        %725 = vmatpush1.msra.mxu0 0.0
        %726 = vmatprep.subr.mxu0 0.0
        %727 = vmatpush1.msra.mxu0 0.0
        %728 = vmatprep.subr.mxu0 0.0
        %729 = vmatpush1.msra.mxu0 0.0
        %730 = vmatprep.subr.mxu0 0.0
        %731 = vmatpush1.msra.mxu0 0.0
        %732 = vmatprep.subr.mxu0 0.0
        %733 = vmatpush1.msra.mxu0 0.0
        %734 = vmatprep.mubr.f32.mxu0 0.0
        %v735 = vand.u32 %v523, 4294901760
        %736 = vmatmul.mubr.f32.gmra.mrb[0].mxu0 %v735
        %v737 = vpop.f32.mrb[0].mxu0
        %v738 = vadd.f32 %v616, %v737
        %v739 = vpop.f32.mrb[0].mxu0
        %v740 = vadd.f32 %v618, %v739
        %741 = vdwg.mxu0
        %v742 = vand.u32 %v501, 4294901760
        %v743 = vsub.f32 %v501, %v742
        %744 = vmatprep.subr.mxu0 %v743
        %v745 = vand.u32 %v500, 4294901760
        %v746 = vsub.f32 %v500, %v745
        %747 = vmatpush1.msra.mxu0 %v746
        %v748 = vand.u32 %v504, 4294901760
        %v749 = vsub.f32 %v504, %v748
        %750 = vmatprep.subr.mxu0 %v749
        %v751 = vand.u32 %v503, 4294901760
        %v752 = vsub.f32 %v503, %v751
        %753 = vmatpush1.msra.mxu0 %v752
        %v754 = vand.u32 %v507, 4294901760
        %v755 = vsub.f32 %v507, %v754
        %756 = vmatprep.subr.mxu0 %v755
        %v757 = vand.u32 %v506, 4294901760
        %v758 = vsub.f32 %v506, %v757
        %759 = vmatpush1.msra.mxu0 %v758
        %v760 = vand.u32 %v510, 4294901760
        %v761 = vsub.f32 %v510, %v760
        %762 = vmatprep.subr.mxu0 %v761
        %v763 = vand.u32 %v509, 4294901760
        %v764 = vsub.f32 %v509, %v763
        %765 = vmatpush1.msra.mxu0 %v764
        %v766 = vand.u32 %v529, 4294901760
        %v767 = vsub.f32 %v529, %v766
        %768 = vmatprep.subr.mxu0 %v767
        %v769 = vand.u32 %v526, 4294901760
        %v770 = vsub.f32 %v526, %v769
        %771 = vmatpush1.msra.mxu0 %v770
        %772 = vmatprep.subr.mxu0 0.0
        %773 = vmatpush1.msra.mxu0 0.0
        %774 = vmatprep.subr.mxu0 0.0
        %775 = vmatpush1.msra.mxu0 0.0
        %776 = vmatprep.subr.mxu0 0.0
        %777 = vmatpush1.msra.mxu0 0.0
        %778 = vmatprep.subr.mxu0 0.0
        %779 = vmatpush1.msra.mxu0 0.0
        %780 = vmatprep.subr.mxu0 0.0
        %781 = vmatpush1.msra.mxu0 0.0
        %782 = vmatprep.subr.mxu0 0.0
        %783 = vmatpush1.msra.mxu0 0.0
        %784 = vmatprep.subr.mxu0 0.0
        %785 = vmatpush1.msra.mxu0 0.0
        %786 = vmatprep.subr.mxu0 0.0
        %787 = vmatpush1.msra.mxu0 0.0
        %788 = vmatprep.subr.mxu0 0.0
        %789 = vmatpush1.msra.mxu0 0.0
        %790 = vmatprep.subr.mxu0 0.0
        %791 = vmatpush1.msra.mxu0 0.0
        %792 = vmatprep.subr.mxu0 0.0
        %793 = vmatpush1.msra.mxu0 0.0
        %794 = vmatprep.subr.mxu0 0.0
        %795 = vmatpush1.msra.mxu0 0.0
        %796 = vmatprep.subr.mxu0 0.0
        %797 = vmatpush1.msra.mxu0 0.0
        %798 = vmatprep.subr.mxu0 0.0
        %799 = vmatpush1.msra.mxu0 0.0
        %800 = vmatprep.subr.mxu0 0.0
        %801 = vmatpush1.msra.mxu0 0.0
        %802 = vmatprep.subr.mxu0 0.0
        %803 = vmatpush1.msra.mxu0 0.0
        %804 = vmatprep.subr.mxu0 0.0
        %805 = vmatpush1.msra.mxu0 0.0
        %806 = vmatprep.subr.mxu0 0.0
        %807 = vmatpush1.msra.mxu0 0.0
        %808 = vmatprep.subr.mxu0 0.0
        %809 = vmatpush1.msra.mxu0 0.0
        %810 = vmatprep.subr.mxu0 0.0
        %811 = vmatpush1.msra.mxu0 0.0
        %812 = vmatprep.subr.mxu0 0.0
        %813 = vmatpush1.msra.mxu0 0.0
        %814 = vmatprep.subr.mxu0 0.0
        %815 = vmatpush1.msra.mxu0 0.0
        %816 = vmatprep.subr.mxu0 0.0
        %817 = vmatpush1.msra.mxu0 0.0
        %818 = vmatprep.subr.mxu0 0.0
        %819 = vmatpush1.msra.mxu0 0.0
        %820 = vmatprep.subr.mxu0 0.0
        %821 = vmatpush1.msra.mxu0 0.0
        %822 = vmatprep.subr.mxu0 0.0
        %823 = vmatpush1.msra.mxu0 0.0
        %824 = vmatprep.subr.mxu0 0.0
        %825 = vmatpush1.msra.mxu0 0.0
        %826 = vmatprep.mubr.f32.mxu0 0.0
        %v827 = vand.u32 %v523, 4294901760
        %v828 = vsub.f32 %v523, %v827
        %829 = vmatmul.mubr.f32.gmra.mrb[0].mxu0 %v828
        %v830 = vpop.f32.mrb[0].mxu0
        %v831 = vadd.f32 %v738, %v830
        %v832 = vpop.f32.mrb[0].mxu0
        %v833 = vadd.f32 %v740, %v832
        %834 = vdwg.mxu0
        %v835 = vand.u32 %v501, 4294901760
        %836 = vmatprep.subr.mxu0 %v835
        %v837 = vand.u32 %v500, 4294901760
        %838 = vmatpush1.msra.mxu0 %v837
        %v839 = vand.u32 %v504, 4294901760
        %840 = vmatprep.subr.mxu0 %v839
        %v841 = vand.u32 %v503, 4294901760
        %842 = vmatpush1.msra.mxu0 %v841
        %v843 = vand.u32 %v507, 4294901760
        %844 = vmatprep.subr.mxu0 %v843
        %v845 = vand.u32 %v506, 4294901760
        %846 = vmatpush1.msra.mxu0 %v845
        %v847 = vand.u32 %v510, 4294901760
        %848 = vmatprep.subr.mxu0 %v847
        %v849 = vand.u32 %v509, 4294901760
        %850 = vmatpush1.msra.mxu0 %v849
        %v851 = vand.u32 %v529, 4294901760
        %852 = vmatprep.subr.mxu0 %v851
        %v853 = vand.u32 %v526, 4294901760
        %854 = vmatpush1.msra.mxu0 %v853
        %855 = vmatprep.subr.mxu0 0.0
        %856 = vmatpush1.msra.mxu0 0.0
        %857 = vmatprep.subr.mxu0 0.0
        %858 = vmatpush1.msra.mxu0 0.0
        %859 = vmatprep.subr.mxu0 0.0
        %860 = vmatpush1.msra.mxu0 0.0
        %861 = vmatprep.subr.mxu0 0.0
        %862 = vmatpush1.msra.mxu0 0.0
        %863 = vmatprep.subr.mxu0 0.0
        %864 = vmatpush1.msra.mxu0 0.0
        %865 = vmatprep.subr.mxu0 0.0
        %866 = vmatpush1.msra.mxu0 0.0
        %867 = vmatprep.subr.mxu0 0.0
        %868 = vmatpush1.msra.mxu0 0.0
        %869 = vmatprep.subr.mxu0 0.0
        %870 = vmatpush1.msra.mxu0 0.0
        %871 = vmatprep.subr.mxu0 0.0
        %872 = vmatpush1.msra.mxu0 0.0
        %873 = vmatprep.subr.mxu0 0.0
        %874 = vmatpush1.msra.mxu0 0.0
        %875 = vmatprep.subr.mxu0 0.0
        %876 = vmatpush1.msra.mxu0 0.0
        %877 = vmatprep.subr.mxu0 0.0
        %878 = vmatpush1.msra.mxu0 0.0
        %879 = vmatprep.subr.mxu0 0.0
        %880 = vmatpush1.msra.mxu0 0.0
        %881 = vmatprep.subr.mxu0 0.0
        %882 = vmatpush1.msra.mxu0 0.0
        %883 = vmatprep.subr.mxu0 0.0
        %884 = vmatpush1.msra.mxu0 0.0
        %885 = vmatprep.subr.mxu0 0.0
        %886 = vmatpush1.msra.mxu0 0.0
        %887 = vmatprep.subr.mxu0 0.0
        %888 = vmatpush1.msra.mxu0 0.0
        %889 = vmatprep.subr.mxu0 0.0
        %890 = vmatpush1.msra.mxu0 0.0
        %891 = vmatprep.subr.mxu0 0.0
        %892 = vmatpush1.msra.mxu0 0.0
        %893 = vmatprep.subr.mxu0 0.0
        %894 = vmatpush1.msra.mxu0 0.0
        %895 = vmatprep.subr.mxu0 0.0
        %896 = vmatpush1.msra.mxu0 0.0
        %897 = vmatprep.subr.mxu0 0.0
        %898 = vmatpush1.msra.mxu0 0.0
        %899 = vmatprep.subr.mxu0 0.0
        %900 = vmatpush1.msra.mxu0 0.0
        %901 = vmatprep.subr.mxu0 0.0
        %902 = vmatpush1.msra.mxu0 0.0
        %903 = vmatprep.subr.mxu0 0.0
        %904 = vmatpush1.msra.mxu0 0.0
        %905 = vmatprep.subr.mxu0 0.0
        %906 = vmatpush1.msra.mxu0 0.0
        %907 = vmatprep.subr.mxu0 0.0
        %908 = vmatpush1.msra.mxu0 0.0
        %909 = vmatprep.mubr.f32.mxu0 0.0
        %v910 = vand.u32 %v523, 4294901760
        %v911 = vsub.f32 %v523, %v910
        %v912 = vand.u32 %v911, 4294901760
        %913 = vmatmul.mubr.f32.gmra.mrb[0].mxu0 %v912
        %v914 = vpop.f32.mrb[0].mxu0
        %v915 = vadd.f32 %v831, %v914
        %v916 = vpop.f32.mrb[0].mxu0
        %v917 = vadd.f32 %v833, %v916
        %918 = vdwg.mxu0
        %v919 = vand.u32 %v501, 4294901760
        %v920 = vsub.f32 %v501, %v919
        %v921 = vand.u32 %v920, 4294901760
        %922 = vmatprep.subr.mxu0 %v921
        %v923 = vand.u32 %v500, 4294901760
        %v924 = vsub.f32 %v500, %v923
        %v925 = vand.u32 %v924, 4294901760
        %926 = vmatpush1.msra.mxu0 %v925
        %v927 = vand.u32 %v504, 4294901760
        %v928 = vsub.f32 %v504, %v927
        %v929 = vand.u32 %v928, 4294901760
        %930 = vmatprep.subr.mxu0 %v929
        %v931 = vand.u32 %v503, 4294901760
        %v932 = vsub.f32 %v503, %v931
        %v933 = vand.u32 %v932, 4294901760
        %934 = vmatpush1.msra.mxu0 %v933
        %v935 = vand.u32 %v507, 4294901760
        %v936 = vsub.f32 %v507, %v935
        %v937 = vand.u32 %v936, 4294901760
        %938 = vmatprep.subr.mxu0 %v937
        %v939 = vand.u32 %v506, 4294901760
        %v940 = vsub.f32 %v506, %v939
        %v941 = vand.u32 %v940, 4294901760
        %942 = vmatpush1.msra.mxu0 %v941
        %v943 = vand.u32 %v510, 4294901760
        %v944 = vsub.f32 %v510, %v943
        %v945 = vand.u32 %v944, 4294901760
        %946 = vmatprep.subr.mxu0 %v945
        %v947 = vand.u32 %v509, 4294901760
        %v948 = vsub.f32 %v509, %v947
        %v949 = vand.u32 %v948, 4294901760
        %950 = vmatpush1.msra.mxu0 %v949
        %v951 = vand.u32 %v529, 4294901760
        %v952 = vsub.f32 %v529, %v951
        %v953 = vand.u32 %v952, 4294901760
        %954 = vmatprep.subr.mxu0 %v953
        %v955 = vand.u32 %v526, 4294901760
        %v956 = vsub.f32 %v526, %v955
        %v957 = vand.u32 %v956, 4294901760
        %958 = vmatpush1.msra.mxu0 %v957
        %959 = vmatprep.subr.mxu0 0.0
        %960 = vmatpush1.msra.mxu0 0.0
        %961 = vmatprep.subr.mxu0 0.0
        %962 = vmatpush1.msra.mxu0 0.0
        %963 = vmatprep.subr.mxu0 0.0
        %964 = vmatpush1.msra.mxu0 0.0
        %965 = vmatprep.subr.mxu0 0.0
        %966 = vmatpush1.msra.mxu0 0.0
        %967 = vmatprep.subr.mxu0 0.0
        %968 = vmatpush1.msra.mxu0 0.0
        %969 = vmatprep.subr.mxu0 0.0
        %970 = vmatpush1.msra.mxu0 0.0
        %971 = vmatprep.subr.mxu0 0.0
        %972 = vmatpush1.msra.mxu0 0.0
        %973 = vmatprep.subr.mxu0 0.0
        %974 = vmatpush1.msra.mxu0 0.0
        %975 = vmatprep.subr.mxu0 0.0
        %976 = vmatpush1.msra.mxu0 0.0
        %977 = vmatprep.subr.mxu0 0.0
        %978 = vmatpush1.msra.mxu0 0.0
        %979 = vmatprep.subr.mxu0 0.0
        %980 = vmatpush1.msra.mxu0 0.0
        %981 = vmatprep.subr.mxu0 0.0
        %982 = vmatpush1.msra.mxu0 0.0
        %983 = vmatprep.subr.mxu0 0.0
        %984 = vmatpush1.msra.mxu0 0.0
        %985 = vmatprep.subr.mxu0 0.0
        %986 = vmatpush1.msra.mxu0 0.0
        %987 = vmatprep.subr.mxu0 0.0
        %988 = vmatpush1.msra.mxu0 0.0
        %989 = vmatprep.subr.mxu0 0.0
        %990 = vmatpush1.msra.mxu0 0.0
        %991 = vmatprep.subr.mxu0 0.0
        %992 = vmatpush1.msra.mxu0 0.0
        %993 = vmatprep.subr.mxu0 0.0
        %994 = vmatpush1.msra.mxu0 0.0
        %995 = vmatprep.subr.mxu0 0.0
        %996 = vmatpush1.msra.mxu0 0.0
        %997 = vmatprep.subr.mxu0 0.0
        %998 = vmatpush1.msra.mxu0 0.0
        %999 = vmatprep.subr.mxu0 0.0
        %1000 = vmatpush1.msra.mxu0 0.0
        %1001 = vmatprep.subr.mxu0 0.0
        %1002 = vmatpush1.msra.mxu0 0.0
        %1003 = vmatprep.subr.mxu0 0.0
        %1004 = vmatpush1.msra.mxu0 0.0
        %1005 = vmatprep.subr.mxu0 0.0
        %1006 = vmatpush1.msra.mxu0 0.0
        %1007 = vmatprep.subr.mxu0 0.0
        %1008 = vmatpush1.msra.mxu0 0.0
        %1009 = vmatprep.subr.mxu0 0.0
        %1010 = vmatpush1.msra.mxu0 0.0
        %1011 = vmatprep.subr.mxu0 0.0
        %1012 = vmatpush1.msra.mxu0 0.0
        %1013 = vmatprep.mubr.f32.mxu0 0.0
        %v1014 = vand.u32 %v523, 4294901760
        %1015 = vmatmul.mubr.f32.gmra.mrb[0].mxu0 %v1014
        %v1016 = vpop.f32.mrb[0].mxu0
        %v1017 = vadd.f32 %v915, %v1016
        %v1018 = vpop.f32.mrb[0].mxu0
        %v1019 = vadd.f32 %v917, %v1018
        %1020 = vdwg.mxu0
        %v1021 = vand.u32 %v501, 4294901760
        %1022 = vmatprep.subr.mxu0 %v1021
        %v1023 = vand.u32 %v500, 4294901760
        %1024 = vmatpush1.msra.mxu0 %v1023
        %v1025 = vand.u32 %v504, 4294901760
        %1026 = vmatprep.subr.mxu0 %v1025
        %v1027 = vand.u32 %v503, 4294901760
        %1028 = vmatpush1.msra.mxu0 %v1027
        %v1029 = vand.u32 %v507, 4294901760
        %1030 = vmatprep.subr.mxu0 %v1029
        %v1031 = vand.u32 %v506, 4294901760
        %1032 = vmatpush1.msra.mxu0 %v1031
        %v1033 = vand.u32 %v510, 4294901760
        %1034 = vmatprep.subr.mxu0 %v1033
        %v1035 = vand.u32 %v509, 4294901760
        %1036 = vmatpush1.msra.mxu0 %v1035
        %v1037 = vand.u32 %v529, 4294901760
        %1038 = vmatprep.subr.mxu0 %v1037
        %v1039 = vand.u32 %v526, 4294901760
        %1040 = vmatpush1.msra.mxu0 %v1039
        %1041 = vmatprep.subr.mxu0 0.0
        %1042 = vmatpush1.msra.mxu0 0.0
        %1043 = vmatprep.subr.mxu0 0.0
        %1044 = vmatpush1.msra.mxu0 0.0
        %1045 = vmatprep.subr.mxu0 0.0
        %1046 = vmatpush1.msra.mxu0 0.0
        %1047 = vmatprep.subr.mxu0 0.0
        %1048 = vmatpush1.msra.mxu0 0.0
        %1049 = vmatprep.subr.mxu0 0.0
        %1050 = vmatpush1.msra.mxu0 0.0
        %1051 = vmatprep.subr.mxu0 0.0
        %1052 = vmatpush1.msra.mxu0 0.0
        %1053 = vmatprep.subr.mxu0 0.0
        %1054 = vmatpush1.msra.mxu0 0.0
        %1055 = vmatprep.subr.mxu0 0.0
        %1056 = vmatpush1.msra.mxu0 0.0
        %1057 = vmatprep.subr.mxu0 0.0
        %1058 = vmatpush1.msra.mxu0 0.0
        %1059 = vmatprep.subr.mxu0 0.0
        %1060 = vmatpush1.msra.mxu0 0.0
        %1061 = vmatprep.subr.mxu0 0.0
        %1062 = vmatpush1.msra.mxu0 0.0
        %1063 = vmatprep.subr.mxu0 0.0
        %1064 = vmatpush1.msra.mxu0 0.0
        %1065 = vmatprep.subr.mxu0 0.0
        %1066 = vmatpush1.msra.mxu0 0.0
        %1067 = vmatprep.subr.mxu0 0.0
        %1068 = vmatpush1.msra.mxu0 0.0
        %1069 = vmatprep.subr.mxu0 0.0
        %1070 = vmatpush1.msra.mxu0 0.0
        %1071 = vmatprep.subr.mxu0 0.0
        %1072 = vmatpush1.msra.mxu0 0.0
        %1073 = vmatprep.subr.mxu0 0.0
        %1074 = vmatpush1.msra.mxu0 0.0
        %1075 = vmatprep.subr.mxu0 0.0
        %1076 = vmatpush1.msra.mxu0 0.0
        %1077 = vmatprep.subr.mxu0 0.0
        %1078 = vmatpush1.msra.mxu0 0.0
        %1079 = vmatprep.subr.mxu0 0.0
        %1080 = vmatpush1.msra.mxu0 0.0
        %1081 = vmatprep.subr.mxu0 0.0
        %1082 = vmatpush1.msra.mxu0 0.0
        %1083 = vmatprep.subr.mxu0 0.0
        %1084 = vmatpush1.msra.mxu0 0.0
        %1085 = vmatprep.subr.mxu0 0.0
        %1086 = vmatpush1.msra.mxu0 0.0
        %1087 = vmatprep.subr.mxu0 0.0
        %1088 = vmatpush1.msra.mxu0 0.0
        %1089 = vmatprep.subr.mxu0 0.0
        %1090 = vmatpush1.msra.mxu0 0.0
        %1091 = vmatprep.subr.mxu0 0.0
        %1092 = vmatpush1.msra.mxu0 0.0
        %1093 = vmatprep.subr.mxu0 0.0
        %1094 = vmatpush1.msra.mxu0 0.0
        %1095 = vmatprep.mubr.f32.mxu0 0.0
        %v1096 = vand.u32 %v523, 4294901760
        %1097 = vmatmul.mubr.f32.gmra.mrb[0].mxu0 %v1096
        %v1098 = vpop.f32.mrb[0].mxu0
        %v1099 = vadd.f32 %v1017, %v1098
        %v1100 = vpop.f32.mrb[0].mxu0
        %v1101 = vadd.f32 %v1019, %v1100
        %1102 = vdwg.mxu0
        %1103 = vmatprep.subr.mxu0 0.0
        %v1104 = vand.u32 %v502, 4294901760
        %1105 = vmatpush1.msra.mxu0 %v1104
        %1106 = vmatprep.subr.mxu0 0.0
        %v1107 = vand.u32 %v505, 4294901760
        %1108 = vmatpush1.msra.mxu0 %v1107
        %1109 = vmatprep.subr.mxu0 0.0
        %v1110 = vand.u32 %v508, 4294901760
        %1111 = vmatpush1.msra.mxu0 %v1110
        %1112 = vmatprep.subr.mxu0 0.0
        %v1113 = vand.u32 %v511, 4294901760
        %1114 = vmatpush1.msra.mxu0 %v1113
        %1115 = vmatprep.subr.mxu0 0.0
        %v1116 = vand.u32 %v532, 4294901760
        %1117 = vmatpush1.msra.mxu0 %v1116
        %1118 = vmatprep.subr.mxu0 0.0
        %1119 = vmatpush1.msra.mxu0 0.0
        %1120 = vmatprep.subr.mxu0 0.0
        %1121 = vmatpush1.msra.mxu0 0.0
        %1122 = vmatprep.subr.mxu0 0.0
        %1123 = vmatpush1.msra.mxu0 0.0
        %1124 = vmatprep.subr.mxu0 0.0
        %1125 = vmatpush1.msra.mxu0 0.0
        %1126 = vmatprep.subr.mxu0 0.0
        %1127 = vmatpush1.msra.mxu0 0.0
        %1128 = vmatprep.subr.mxu0 0.0
        %1129 = vmatpush1.msra.mxu0 0.0
        %1130 = vmatprep.subr.mxu0 0.0
        %1131 = vmatpush1.msra.mxu0 0.0
        %1132 = vmatprep.subr.mxu0 0.0
        %1133 = vmatpush1.msra.mxu0 0.0
        %1134 = vmatprep.subr.mxu0 0.0
        %1135 = vmatpush1.msra.mxu0 0.0
        %1136 = vmatprep.subr.mxu0 0.0
        %1137 = vmatpush1.msra.mxu0 0.0
        %1138 = vmatprep.subr.mxu0 0.0
        %1139 = vmatpush1.msra.mxu0 0.0
        %1140 = vmatprep.subr.mxu0 0.0
        %1141 = vmatpush1.msra.mxu0 0.0
        %1142 = vmatprep.subr.mxu0 0.0
        %1143 = vmatpush1.msra.mxu0 0.0
        %1144 = vmatprep.subr.mxu0 0.0
        %1145 = vmatpush1.msra.mxu0 0.0
        %1146 = vmatprep.subr.mxu0 0.0
        %1147 = vmatpush1.msra.mxu0 0.0
        %1148 = vmatprep.subr.mxu0 0.0
        %1149 = vmatpush1.msra.mxu0 0.0
        %1150 = vmatprep.subr.mxu0 0.0
        %1151 = vmatpush1.msra.mxu0 0.0
        %1152 = vmatprep.subr.mxu0 0.0
        %1153 = vmatpush1.msra.mxu0 0.0
        %1154 = vmatprep.subr.mxu0 0.0
        %1155 = vmatpush1.msra.mxu0 0.0
        %1156 = vmatprep.subr.mxu0 0.0
        %1157 = vmatpush1.msra.mxu0 0.0
        %1158 = vmatprep.subr.mxu0 0.0
        %1159 = vmatpush1.msra.mxu0 0.0
        %1160 = vmatprep.subr.mxu0 0.0
        %1161 = vmatpush1.msra.mxu0 0.0
        %1162 = vmatprep.subr.mxu0 0.0
        %1163 = vmatpush1.msra.mxu0 0.0
        %1164 = vmatprep.subr.mxu0 0.0
        %1165 = vmatpush1.msra.mxu0 0.0
        %1166 = vmatprep.subr.mxu0 0.0
        %1167 = vmatpush1.msra.mxu0 0.0
        %1168 = vmatprep.subr.mxu0 0.0
        %1169 = vmatpush1.msra.mxu0 0.0
        %1170 = vmatprep.subr.mxu0 0.0
        %1171 = vmatpush1.msra.mxu0 0.0
        %1172 = vmatprep.mubr.f32.mxu0 0.0
        %v1173 = vand.u32 %v523, 4294901760
        %v1174 = vsub.f32 %v523, %v1173
        %v1175 = vand.u32 %v1174, 4294901760
        %v1176 = vsub.f32 %v1174, %v1175
        %v1177 = vand.u32 %v1176, 4294901760
        %1178 = vmatmul.mubr.f32.gmra.mrb[0].mxu0 %v1177
        %v1179 = vpop.f32.mrb[0].mxu0
        %v1180 = vadd.f32 %v519, %v1179
        %v1181 = vpop.f32.mrb[0].mxu0
        %1182 = vdwg.mxu0
        %1183 = vmatprep.subr.mxu0 0.0
        %v1184 = vand.u32 %v502, 4294901760
        %v1185 = vsub.f32 %v502, %v1184
        %v1186 = vand.u32 %v1185, 4294901760
        %v1187 = vsub.f32 %v1185, %v1186
        %v1188 = vand.u32 %v1187, 4294901760
        %1189 = vmatpush1.msra.mxu0 %v1188
        %1190 = vmatprep.subr.mxu0 0.0
        %v1191 = vand.u32 %v505, 4294901760
        %v1192 = vsub.f32 %v505, %v1191
        %v1193 = vand.u32 %v1192, 4294901760
        %v1194 = vsub.f32 %v1192, %v1193
        %v1195 = vand.u32 %v1194, 4294901760
        %1196 = vmatpush1.msra.mxu0 %v1195
        %1197 = vmatprep.subr.mxu0 0.0
        %v1198 = vand.u32 %v508, 4294901760
        %v1199 = vsub.f32 %v508, %v1198
        %v1200 = vand.u32 %v1199, 4294901760
        %v1201 = vsub.f32 %v1199, %v1200
        %v1202 = vand.u32 %v1201, 4294901760
        %1203 = vmatpush1.msra.mxu0 %v1202
        %1204 = vmatprep.subr.mxu0 0.0
        %v1205 = vand.u32 %v511, 4294901760
        %v1206 = vsub.f32 %v511, %v1205
        %v1207 = vand.u32 %v1206, 4294901760
        %v1208 = vsub.f32 %v1206, %v1207
        %v1209 = vand.u32 %v1208, 4294901760
        %1210 = vmatpush1.msra.mxu0 %v1209
        %1211 = vmatprep.subr.mxu0 0.0
        %v1212 = vand.u32 %v532, 4294901760
        %v1213 = vsub.f32 %v532, %v1212
        %v1214 = vand.u32 %v1213, 4294901760
        %v1215 = vsub.f32 %v1213, %v1214
        %v1216 = vand.u32 %v1215, 4294901760
        %1217 = vmatpush1.msra.mxu0 %v1216
        %1218 = vmatprep.subr.mxu0 0.0
        %1219 = vmatpush1.msra.mxu0 0.0
        %1220 = vmatprep.subr.mxu0 0.0
        %1221 = vmatpush1.msra.mxu0 0.0
        %1222 = vmatprep.subr.mxu0 0.0
        %1223 = vmatpush1.msra.mxu0 0.0
        %1224 = vmatprep.subr.mxu0 0.0
        %1225 = vmatpush1.msra.mxu0 0.0
        %1226 = vmatprep.subr.mxu0 0.0
        %1227 = vmatpush1.msra.mxu0 0.0
        %1228 = vmatprep.subr.mxu0 0.0
        %1229 = vmatpush1.msra.mxu0 0.0
        %1230 = vmatprep.subr.mxu0 0.0
        %1231 = vmatpush1.msra.mxu0 0.0
        %1232 = vmatprep.subr.mxu0 0.0
        %1233 = vmatpush1.msra.mxu0 0.0
        %1234 = vmatprep.subr.mxu0 0.0
        %1235 = vmatpush1.msra.mxu0 0.0
        %1236 = vmatprep.subr.mxu0 0.0
        %1237 = vmatpush1.msra.mxu0 0.0
        %1238 = vmatprep.subr.mxu0 0.0
        %1239 = vmatpush1.msra.mxu0 0.0
        %1240 = vmatprep.subr.mxu0 0.0
        %1241 = vmatpush1.msra.mxu0 0.0
        %1242 = vmatprep.subr.mxu0 0.0
        %1243 = vmatpush1.msra.mxu0 0.0
        %1244 = vmatprep.subr.mxu0 0.0
        %1245 = vmatpush1.msra.mxu0 0.0
        %1246 = vmatprep.subr.mxu0 0.0
        %1247 = vmatpush1.msra.mxu0 0.0
        %1248 = vmatprep.subr.mxu0 0.0
        %1249 = vmatpush1.msra.mxu0 0.0
        %1250 = vmatprep.subr.mxu0 0.0
        %1251 = vmatpush1.msra.mxu0 0.0
        %1252 = vmatprep.subr.mxu0 0.0
        %1253 = vmatpush1.msra.mxu0 0.0
        %1254 = vmatprep.subr.mxu0 0.0
        %1255 = vmatpush1.msra.mxu0 0.0
        %1256 = vmatprep.subr.mxu0 0.0
        %1257 = vmatpush1.msra.mxu0 0.0
        %1258 = vmatprep.subr.mxu0 0.0
        %1259 = vmatpush1.msra.mxu0 0.0
        %1260 = vmatprep.subr.mxu0 0.0
        %1261 = vmatpush1.msra.mxu0 0.0
        %1262 = vmatprep.subr.mxu0 0.0
        %1263 = vmatpush1.msra.mxu0 0.0
        %1264 = vmatprep.subr.mxu0 0.0
        %1265 = vmatpush1.msra.mxu0 0.0
        %1266 = vmatprep.subr.mxu0 0.0
        %1267 = vmatpush1.msra.mxu0 0.0
        %1268 = vmatprep.subr.mxu0 0.0
        %1269 = vmatpush1.msra.mxu0 0.0
        %1270 = vmatprep.subr.mxu0 0.0
        %1271 = vmatpush1.msra.mxu0 0.0
        %1272 = vmatprep.mubr.f32.mxu0 0.0
        %v1273 = vand.u32 %v523, 4294901760
        %1274 = vmatmul.mubr.f32.gmra.mrb[0].mxu0 %v1273
        %v1275 = vpop.f32.mrb[0].mxu0
        %v1276 = vadd.f32 %v1180, %v1275
        %v1277 = vpop.f32.mrb[0].mxu0
        %1278 = vdwg.mxu0
        %1279 = vmatprep.subr.mxu0 0.0
        %v1280 = vand.u32 %v502, 4294901760
        %v1281 = vsub.f32 %v502, %v1280
        %1282 = vmatpush1.msra.mxu0 %v1281
        %1283 = vmatprep.subr.mxu0 0.0
        %v1284 = vand.u32 %v505, 4294901760
        %v1285 = vsub.f32 %v505, %v1284
        %1286 = vmatpush1.msra.mxu0 %v1285
        %1287 = vmatprep.subr.mxu0 0.0
        %v1288 = vand.u32 %v508, 4294901760
        %v1289 = vsub.f32 %v508, %v1288
        %1290 = vmatpush1.msra.mxu0 %v1289
        %1291 = vmatprep.subr.mxu0 0.0
        %v1292 = vand.u32 %v511, 4294901760
        %v1293 = vsub.f32 %v511, %v1292
        %1294 = vmatpush1.msra.mxu0 %v1293
        %1295 = vmatprep.subr.mxu0 0.0
        %v1296 = vand.u32 %v532, 4294901760
        %v1297 = vsub.f32 %v532, %v1296
        %1298 = vmatpush1.msra.mxu0 %v1297
        %1299 = vmatprep.subr.mxu0 0.0
        %1300 = vmatpush1.msra.mxu0 0.0
        %1301 = vmatprep.subr.mxu0 0.0
        %1302 = vmatpush1.msra.mxu0 0.0
        %1303 = vmatprep.subr.mxu0 0.0
        %1304 = vmatpush1.msra.mxu0 0.0
        %1305 = vmatprep.subr.mxu0 0.0
        %1306 = vmatpush1.msra.mxu0 0.0
        %1307 = vmatprep.subr.mxu0 0.0
        %1308 = vmatpush1.msra.mxu0 0.0
        %1309 = vmatprep.subr.mxu0 0.0
        %1310 = vmatpush1.msra.mxu0 0.0
        %1311 = vmatprep.subr.mxu0 0.0
        %1312 = vmatpush1.msra.mxu0 0.0
        %1313 = vmatprep.subr.mxu0 0.0
        %1314 = vmatpush1.msra.mxu0 0.0
        %1315 = vmatprep.subr.mxu0 0.0
        %1316 = vmatpush1.msra.mxu0 0.0
        %1317 = vmatprep.subr.mxu0 0.0
        %1318 = vmatpush1.msra.mxu0 0.0
        %1319 = vmatprep.subr.mxu0 0.0
        %1320 = vmatpush1.msra.mxu0 0.0
        %1321 = vmatprep.subr.mxu0 0.0
        %1322 = vmatpush1.msra.mxu0 0.0
        %1323 = vmatprep.subr.mxu0 0.0
        %1324 = vmatpush1.msra.mxu0 0.0
        %1325 = vmatprep.subr.mxu0 0.0
        %1326 = vmatpush1.msra.mxu0 0.0
        %1327 = vmatprep.subr.mxu0 0.0
        %1328 = vmatpush1.msra.mxu0 0.0
        %1329 = vmatprep.subr.mxu0 0.0
        %1330 = vmatpush1.msra.mxu0 0.0
        %1331 = vmatprep.subr.mxu0 0.0
        %1332 = vmatpush1.msra.mxu0 0.0
        %1333 = vmatprep.subr.mxu0 0.0
        %1334 = vmatpush1.msra.mxu0 0.0
        %1335 = vmatprep.subr.mxu0 0.0
        %1336 = vmatpush1.msra.mxu0 0.0
        %1337 = vmatprep.subr.mxu0 0.0
        %1338 = vmatpush1.msra.mxu0 0.0
        %1339 = vmatprep.subr.mxu0 0.0
        %1340 = vmatpush1.msra.mxu0 0.0
        %1341 = vmatprep.subr.mxu0 0.0
        %1342 = vmatpush1.msra.mxu0 0.0
        %1343 = vmatprep.subr.mxu0 0.0
        %1344 = vmatpush1.msra.mxu0 0.0
        %1345 = vmatprep.subr.mxu0 0.0
        %1346 = vmatpush1.msra.mxu0 0.0
        %1347 = vmatprep.subr.mxu0 0.0
        %1348 = vmatpush1.msra.mxu0 0.0
        %1349 = vmatprep.subr.mxu0 0.0
        %1350 = vmatpush1.msra.mxu0 0.0
        %1351 = vmatprep.subr.mxu0 0.0
        %1352 = vmatpush1.msra.mxu0 0.0
        %1353 = vmatprep.mubr.f32.mxu0 0.0
        %v1354 = vand.u32 %v523, 4294901760
        %v1355 = vsub.f32 %v523, %v1354
        %1356 = vmatmul.mubr.f32.gmra.mrb[0].mxu0 %v1355
        %v1357 = vpop.f32.mrb[0].mxu0
        %v1358 = vadd.f32 %v1276, %v1357
        %v1359 = vpop.f32.mrb[0].mxu0
        %1360 = vdwg.mxu0
        %1361 = vmatprep.subr.mxu0 0.0
        %v1362 = vand.u32 %v502, 4294901760
        %1363 = vmatpush1.msra.mxu0 %v1362
        %1364 = vmatprep.subr.mxu0 0.0
        %v1365 = vand.u32 %v505, 4294901760
        %1366 = vmatpush1.msra.mxu0 %v1365
        %1367 = vmatprep.subr.mxu0 0.0
        %v1368 = vand.u32 %v508, 4294901760
        %1369 = vmatpush1.msra.mxu0 %v1368
        %1370 = vmatprep.subr.mxu0 0.0
        %v1371 = vand.u32 %v511, 4294901760
        %1372 = vmatpush1.msra.mxu0 %v1371
        %1373 = vmatprep.subr.mxu0 0.0
        %v1374 = vand.u32 %v532, 4294901760
        %1375 = vmatpush1.msra.mxu0 %v1374
        %1376 = vmatprep.subr.mxu0 0.0
        %1377 = vmatpush1.msra.mxu0 0.0
        %1378 = vmatprep.subr.mxu0 0.0
        %1379 = vmatpush1.msra.mxu0 0.0
        %1380 = vmatprep.subr.mxu0 0.0
        %1381 = vmatpush1.msra.mxu0 0.0
        %1382 = vmatprep.subr.mxu0 0.0
        %1383 = vmatpush1.msra.mxu0 0.0
        %1384 = vmatprep.subr.mxu0 0.0
        %1385 = vmatpush1.msra.mxu0 0.0
        %1386 = vmatprep.subr.mxu0 0.0
        %1387 = vmatpush1.msra.mxu0 0.0
        %1388 = vmatprep.subr.mxu0 0.0
        %1389 = vmatpush1.msra.mxu0 0.0
        %1390 = vmatprep.subr.mxu0 0.0
        %1391 = vmatpush1.msra.mxu0 0.0
        %1392 = vmatprep.subr.mxu0 0.0
        %1393 = vmatpush1.msra.mxu0 0.0
        %1394 = vmatprep.subr.mxu0 0.0
        %1395 = vmatpush1.msra.mxu0 0.0
        %1396 = vmatprep.subr.mxu0 0.0
        %1397 = vmatpush1.msra.mxu0 0.0
        %1398 = vmatprep.subr.mxu0 0.0
        %1399 = vmatpush1.msra.mxu0 0.0
        %1400 = vmatprep.subr.mxu0 0.0
        %1401 = vmatpush1.msra.mxu0 0.0
        %1402 = vmatprep.subr.mxu0 0.0
        %1403 = vmatpush1.msra.mxu0 0.0
        %1404 = vmatprep.subr.mxu0 0.0
        %1405 = vmatpush1.msra.mxu0 0.0
        %1406 = vmatprep.subr.mxu0 0.0
        %1407 = vmatpush1.msra.mxu0 0.0
        %1408 = vmatprep.subr.mxu0 0.0
        %1409 = vmatpush1.msra.mxu0 0.0
        %1410 = vmatprep.subr.mxu0 0.0
        %1411 = vmatpush1.msra.mxu0 0.0
        %1412 = vmatprep.subr.mxu0 0.0
        %1413 = vmatpush1.msra.mxu0 0.0
        %1414 = vmatprep.subr.mxu0 0.0
        %1415 = vmatpush1.msra.mxu0 0.0
        %1416 = vmatprep.subr.mxu0 0.0
        %1417 = vmatpush1.msra.mxu0 0.0
        %1418 = vmatprep.subr.mxu0 0.0
        %1419 = vmatpush1.msra.mxu0 0.0
        %1420 = vmatprep.subr.mxu0 0.0
        %1421 = vmatpush1.msra.mxu0 0.0
        %1422 = vmatprep.subr.mxu0 0.0
        %1423 = vmatpush1.msra.mxu0 0.0
        %1424 = vmatprep.subr.mxu0 0.0
        %1425 = vmatpush1.msra.mxu0 0.0
        %1426 = vmatprep.subr.mxu0 0.0
        %1427 = vmatpush1.msra.mxu0 0.0
        %1428 = vmatprep.subr.mxu0 0.0
        %1429 = vmatpush1.msra.mxu0 0.0
        %1430 = vmatprep.mubr.f32.mxu0 0.0
        %v1431 = vand.u32 %v523, 4294901760
        %v1432 = vsub.f32 %v523, %v1431
        %v1433 = vand.u32 %v1432, 4294901760
        %1434 = vmatmul.mubr.f32.gmra.mrb[0].mxu0 %v1433
        %v1435 = vpop.f32.mrb[0].mxu0
        %v1436 = vadd.f32 %v1358, %v1435
        %v1437 = vpop.f32.mrb[0].mxu0
        %1438 = vdwg.mxu0
        %1439 = vmatprep.subr.mxu0 0.0
        %v1440 = vand.u32 %v502, 4294901760
        %v1441 = vsub.f32 %v502, %v1440
        %v1442 = vand.u32 %v1441, 4294901760
        %1443 = vmatpush1.msra.mxu0 %v1442
        %1444 = vmatprep.subr.mxu0 0.0
        %v1445 = vand.u32 %v505, 4294901760
        %v1446 = vsub.f32 %v505, %v1445
        %v1447 = vand.u32 %v1446, 4294901760
        %1448 = vmatpush1.msra.mxu0 %v1447
        %1449 = vmatprep.subr.mxu0 0.0
        %v1450 = vand.u32 %v508, 4294901760
        %v1451 = vsub.f32 %v508, %v1450
        %v1452 = vand.u32 %v1451, 4294901760
        %1453 = vmatpush1.msra.mxu0 %v1452
        %1454 = vmatprep.subr.mxu0 0.0
        %v1455 = vand.u32 %v511, 4294901760
        %v1456 = vsub.f32 %v511, %v1455
        %v1457 = vand.u32 %v1456, 4294901760
        %1458 = vmatpush1.msra.mxu0 %v1457
        %1459 = vmatprep.subr.mxu0 0.0
        %v1460 = vand.u32 %v532, 4294901760
        %v1461 = vsub.f32 %v532, %v1460
        %v1462 = vand.u32 %v1461, 4294901760
        %1463 = vmatpush1.msra.mxu0 %v1462
        %1464 = vmatprep.subr.mxu0 0.0
        %1465 = vmatpush1.msra.mxu0 0.0
        %1466 = vmatprep.subr.mxu0 0.0
        %1467 = vmatpush1.msra.mxu0 0.0
        %1468 = vmatprep.subr.mxu0 0.0
        %1469 = vmatpush1.msra.mxu0 0.0
        %1470 = vmatprep.subr.mxu0 0.0
        %1471 = vmatpush1.msra.mxu0 0.0
        %1472 = vmatprep.subr.mxu0 0.0
        %1473 = vmatpush1.msra.mxu0 0.0
        %1474 = vmatprep.subr.mxu0 0.0
        %1475 = vmatpush1.msra.mxu0 0.0
        %1476 = vmatprep.subr.mxu0 0.0
        %1477 = vmatpush1.msra.mxu0 0.0
        %1478 = vmatprep.subr.mxu0 0.0
        %1479 = vmatpush1.msra.mxu0 0.0
        %1480 = vmatprep.subr.mxu0 0.0
        %1481 = vmatpush1.msra.mxu0 0.0
        %1482 = vmatprep.subr.mxu0 0.0
        %1483 = vmatpush1.msra.mxu0 0.0
        %1484 = vmatprep.subr.mxu0 0.0
        %1485 = vmatpush1.msra.mxu0 0.0
        %1486 = vmatprep.subr.mxu0 0.0
        %1487 = vmatpush1.msra.mxu0 0.0
        %1488 = vmatprep.subr.mxu0 0.0
        %1489 = vmatpush1.msra.mxu0 0.0
        %1490 = vmatprep.subr.mxu0 0.0
        %1491 = vmatpush1.msra.mxu0 0.0
        %1492 = vmatprep.subr.mxu0 0.0
        %1493 = vmatpush1.msra.mxu0 0.0
        %1494 = vmatprep.subr.mxu0 0.0
        %1495 = vmatpush1.msra.mxu0 0.0
        %1496 = vmatprep.subr.mxu0 0.0
        %1497 = vmatpush1.msra.mxu0 0.0
        %1498 = vmatprep.subr.mxu0 0.0
        %1499 = vmatpush1.msra.mxu0 0.0
        %1500 = vmatprep.subr.mxu0 0.0
        %1501 = vmatpush1.msra.mxu0 0.0
        %1502 = vmatprep.subr.mxu0 0.0
        %1503 = vmatpush1.msra.mxu0 0.0
        %1504 = vmatprep.subr.mxu0 0.0
        %1505 = vmatpush1.msra.mxu0 0.0
        %1506 = vmatprep.subr.mxu0 0.0
        %1507 = vmatpush1.msra.mxu0 0.0
        %1508 = vmatprep.subr.mxu0 0.0
        %1509 = vmatpush1.msra.mxu0 0.0
        %1510 = vmatprep.subr.mxu0 0.0
        %1511 = vmatpush1.msra.mxu0 0.0
        %1512 = vmatprep.subr.mxu0 0.0
        %1513 = vmatpush1.msra.mxu0 0.0
        %1514 = vmatprep.subr.mxu0 0.0
        %1515 = vmatpush1.msra.mxu0 0.0
        %1516 = vmatprep.subr.mxu0 0.0
        %1517 = vmatpush1.msra.mxu0 0.0
        %1518 = vmatprep.mubr.f32.mxu0 0.0
        %v1519 = vand.u32 %v523, 4294901760
        %1520 = vmatmul.mubr.f32.gmra.mrb[0].mxu0 %v1519
        %v1521 = vpop.f32.mrb[0].mxu0
        %v1522 = vadd.f32 %v1436, %v1521
        %v1523 = vpop.f32.mrb[0].mxu0
        %1524 = vdwg.mxu0
        %1525 = vmatprep.subr.mxu0 0.0
        %v1526 = vand.u32 %v502, 4294901760
        %1527 = vmatpush1.msra.mxu0 %v1526
        %1528 = vmatprep.subr.mxu0 0.0
        %v1529 = vand.u32 %v505, 4294901760
        %1530 = vmatpush1.msra.mxu0 %v1529
        %1531 = vmatprep.subr.mxu0 0.0
        %v1532 = vand.u32 %v508, 4294901760
        %1533 = vmatpush1.msra.mxu0 %v1532
        %1534 = vmatprep.subr.mxu0 0.0
        %v1535 = vand.u32 %v511, 4294901760
        %1536 = vmatpush1.msra.mxu0 %v1535
        %1537 = vmatprep.subr.mxu0 0.0
        %v1538 = vand.u32 %v532, 4294901760
        %1539 = vmatpush1.msra.mxu0 %v1538
        %1540 = vmatprep.subr.mxu0 0.0
        %1541 = vmatpush1.msra.mxu0 0.0
        %1542 = vmatprep.subr.mxu0 0.0
        %1543 = vmatpush1.msra.mxu0 0.0
        %1544 = vmatprep.subr.mxu0 0.0
        %1545 = vmatpush1.msra.mxu0 0.0
        %1546 = vmatprep.subr.mxu0 0.0
        %1547 = vmatpush1.msra.mxu0 0.0
        %1548 = vmatprep.subr.mxu0 0.0
        %1549 = vmatpush1.msra.mxu0 0.0
        %1550 = vmatprep.subr.mxu0 0.0
        %1551 = vmatpush1.msra.mxu0 0.0
        %1552 = vmatprep.subr.mxu0 0.0
        %1553 = vmatpush1.msra.mxu0 0.0
        %1554 = vmatprep.subr.mxu0 0.0
        %1555 = vmatpush1.msra.mxu0 0.0
        %1556 = vmatprep.subr.mxu0 0.0
        %1557 = vmatpush1.msra.mxu0 0.0
        %1558 = vmatprep.subr.mxu0 0.0
        %1559 = vmatpush1.msra.mxu0 0.0
        %1560 = vmatprep.subr.mxu0 0.0
        %1561 = vmatpush1.msra.mxu0 0.0
        %1562 = vmatprep.subr.mxu0 0.0
        %1563 = vmatpush1.msra.mxu0 0.0
        %1564 = vmatprep.subr.mxu0 0.0
        %1565 = vmatpush1.msra.mxu0 0.0
        %1566 = vmatprep.subr.mxu0 0.0
        %1567 = vmatpush1.msra.mxu0 0.0
        %1568 = vmatprep.subr.mxu0 0.0
        %1569 = vmatpush1.msra.mxu0 0.0
        %1570 = vmatprep.subr.mxu0 0.0
        %1571 = vmatpush1.msra.mxu0 0.0
        %1572 = vmatprep.subr.mxu0 0.0
        %1573 = vmatpush1.msra.mxu0 0.0
        %1574 = vmatprep.subr.mxu0 0.0
        %1575 = vmatpush1.msra.mxu0 0.0
        %1576 = vmatprep.subr.mxu0 0.0
        %1577 = vmatpush1.msra.mxu0 0.0
        %1578 = vmatprep.subr.mxu0 0.0
        %1579 = vmatpush1.msra.mxu0 0.0
        %1580 = vmatprep.subr.mxu0 0.0
        %1581 = vmatpush1.msra.mxu0 0.0
        %1582 = vmatprep.subr.mxu0 0.0
        %1583 = vmatpush1.msra.mxu0 0.0
        %1584 = vmatprep.subr.mxu0 0.0
        %1585 = vmatpush1.msra.mxu0 0.0
        %1586 = vmatprep.subr.mxu0 0.0
        %1587 = vmatpush1.msra.mxu0 0.0
        %1588 = vmatprep.subr.mxu0 0.0
        %1589 = vmatpush1.msra.mxu0 0.0
        %1590 = vmatprep.subr.mxu0 0.0
        %1591 = vmatpush1.msra.mxu0 0.0
        %1592 = vmatprep.subr.mxu0 0.0
        %1593 = vmatpush1.msra.mxu0 0.0
        %1594 = vmatprep.mubr.f32.mxu0 0.0
        %v1595 = vand.u32 %v523, 4294901760
        %1596 = vmatmul.mubr.f32.gmra.mrb[0].mxu0 %v1595
        %v1597 = vpop.f32.mrb[0].mxu0
        %v1598 = vadd.f32 %v1522, %v1597
        %v1599 = vpop.f32.mrb[0].mxu0
        %1600 = vdwg.mxu0
        %vm1601 = vcmask 124928
        %1602 = vst.msk [vmem:[%s188] sm:$0x7] %vm1601, %v1099
        %1604 = vrot.lane.b32.xlu0 %v1099, 120
        %v1605 = vpop.permute.xlu0 %1604
        %vm1607 = vcmask 256128
        %1608 = vst.msk [vmem:[%s188] sm:$0x7] %vm1607, %v1605
        %1609 = vrot.lane.b32.xlu0 %v1099, 112
        %v1610 = vpop.permute.xlu0 %1609
        %vm1612 = vcmask 387328
        %1613 = vst.msk [vmem:[%s188] sm:$0x7] %vm1612, %v1610
        %1614 = vrot.lane.b32.xlu0 %v1099, 104
        %v1615 = vpop.permute.xlu0 %1614
        %vm1617 = vcmask 518528
        %1618 = vst.msk [vmem:[%s188] sm:$0x7] %vm1617, %v1615
        %1619 = vrot.lane.b32.xlu0 %v1099, 96
        %v1620 = vpop.permute.xlu0 %1619
        %vm1622 = vcmask 649728
        %1623 = vst.msk [vmem:[%s188] sm:$0x7] %vm1622, %v1620
        %v1625 = vcombine.low %v1099, %v1101
        %1626 = vrot.lane.b32.xlu0 %v1625, 88
        %v1627 = vpop.permute.xlu0 %1626
        %v1628 = vrot.slane %v1627, 4
        %vm1629 = vcmask 719872
        %v1630 = vsel %vm1629, %v1627, %v1628
        %vm1632 = vcmask 780928
        %1633 = vst.msk [vmem:[%s188] sm:$0x7] %vm1632, %v1630
        %1634 = vrot.lane.b32.xlu0 %v1101, 80
        %v1635 = vpop.permute.xlu0 %1634
        %vm1637 = vcmask 912128
        %1638 = vst.msk [vmem:[%s188] sm:$0x7] %vm1637, %v1635
        %1639 = vrot.lane.b32.xlu0 %v1101, 72
        %v1640 = vpop.permute.xlu0 %1639
        %vm1642 = vcmask 1043328
        %1643 = vst.msk [vmem:[%s188] sm:$0x7] %vm1642, %v1640
        %1644 = vrot.lane.b32.xlu0 %v1101, 64
        %v1645 = vpop.permute.xlu0 %1644
        %1647 = vst.msk [vmem:[%s188 + $0x4] sm:$0x7] %vm1601, %v1645
        %1648 = vrot.lane.b32.xlu0 %v1101, 56
        %v1649 = vpop.permute.xlu0 %1648
        %1651 = vst.msk [vmem:[%s188 + $0x4] sm:$0x7] %vm1607, %v1649
        %1652 = vrot.lane.b32.xlu0 %v1101, 48
        %v1653 = vpop.permute.xlu0 %1652
        %1655 = vst.msk [vmem:[%s188 + $0x4] sm:$0x7] %vm1612, %v1653
        %1657 = vrot.lane.b32.xlu0 %v1598, 40
        %v1658 = vpop.permute.xlu0 %1657
        %1660 = vst.msk [vmem:[%s188 + $0x4] sm:$0x7] %vm1617, %v1658
        %1661 = vrot.lane.b32.xlu0 %v1598, 32
        %v1662 = vpop.permute.xlu0 %1661
        %1664 = vst.msk [vmem:[%s188 + $0x4] sm:$0x7] %vm1622, %v1662
        %1665 = vrot.lane.b32.xlu0 %v1598, 24
        %v1666 = vpop.permute.xlu0 %1665
        %1668 = vst.msk [vmem:[%s188 + $0x4] sm:$0x7] %vm1632, %v1666
        %1669 = vrot.lane.b32.xlu0 %v1598, 16
        %v1670 = vpop.permute.xlu0 %1669
        %1672 = vst.msk [vmem:[%s188 + $0x4] sm:$0x7] %vm1637, %v1670
        %1673 = vrot.lane.b32.xlu0 %v1598, 8
        %v1674 = vpop.permute.xlu0 %1673
        %1676 = vst.msk [vmem:[%s188 + $0x4] sm:$0x7] %vm1642, %v1674
        %p1677 = scmp.lt.s32.totalorder %s17, 1
        %s1678 = scalar_select %p1677, %s17, 1
        %s1679 = smul.addr %s1678, 2
        %s1680 = smul.addr %s1679, 4
        %s1681 = scalar_lea.vmem %s3, %s1680
        // Predicated region
        $region37: #{tpu_custom_call.1} parent=31 // pred_check
          %p1682 = pneg %p103
        $region38: #{tpu_custom_call.1} parent=31 // pred_check_branch
          %1684 = sbr.rel (%p1682) target = $region40
        $region39: #{tpu_custom_call.1} parent=31 // pred_region
          _
        $region40: #{tpu_custom_call.1} parent=31 // pred_fallthru
          _
      $region32: #{tpu_custom_call.1} parent=5 // pred_fallthru
        _
      %p1685 = scmp.le.s32.totalorder 2, %s12
      // Predicated region
      $region41: #{tpu_custom_call.1} parent=5 // pred_check
        %p1686 = pneg %p1685
      $region42: #{tpu_custom_call.1} parent=5 // pred_check_branch
        %1688 = sbr.rel (%p1686) target = $region44
      $region43: #{tpu_custom_call.1} parent=5 // pred_region
        %s1689 = ssub.s32 %s12, 2
        // Predicated region
        $region45: #{tpu_custom_call.1} parent=43 // pred_check
          %p1690 = pneg %p109
        $region46: #{tpu_custom_call.1} parent=43 // pred_check_branch
          %1692 = sbr.rel (%p1690) target = $region48
        $region47: #{tpu_custom_call.1} parent=43 // pred_region
          %p1693 = scmp.lt.s32.totalorder %s18, 1
          %s1694 = scalar_select %p1693, %s18, 1
          %s1695 = smul.addr %s1694, 2
          %s1696 = smul.addr %s1695, 4
          %s1697 = scalar_lea.vmem %s3, %s1696
        $region48: #{tpu_custom_call.1} parent=43 // pred_fallthru
          _
      $region44: #{tpu_custom_call.1} parent=5 // pred_fallthru
        _
    $region6: #{tpu_custom_call.1} parent=1 // loop_footer
      %s16 = sadd.s32 1, %s12
    $region7: #{tpu_custom_call.1} parent=1 // loop_footer_branch
      %11 = sbr.rel target = $region3
    $region8: #{tpu_custom_call.1} parent=1 // loop_exit
      _
    %1698 = vsyncpa [#allocation5], 1
    %s1699 = scalar_lea.sflag [#allocation5], 1
    %1700 = vsyncpa %s1699, 1

</llo_original>
